<compile_context>
chip_gen: v6e
topology: v6e:2x2x1
jax: 0.10.0
libtpu: 0.0.40
codegen_flags: <defaults>
</compile_context>

<pallas_src>
import jax
import jax.numpy as jnp
from jax.experimental import pallas as pl
from jax.experimental.pallas import tpu as pltpu

HIDDEN = 1800  # fixed by the module definition (dec1_1: Linear(F, 1800))


def _round_up(x, m):
    return ((x + m - 1) // m) * m


def decoder_kernel(z_ref, s_ref, w1_ref, wpk_ref, bpk_ref, o_ref):
    F = z_ref.shape[-1]
    D = o_ref.shape[-1]

    # bf16 operands straight to the MXU; f32 accumulation on every dot.
    z = z_ref[...].astype(jnp.bfloat16)                     # (N, F)
    s = s_ref[...].astype(jnp.bfloat16)                     # (N, N)
    w1 = w1_ref[...]                                        # (F, F)   bf16
    w11 = wpk_ref[:F, :]                                    # (F, Hp)  bf16
    w12 = wpk_ref[F:F + D, :]                               # (D, Hp)  bf16 (lane-dense)
    b1 = bpk_ref[0:1, :]                                    # (1, Hp)  f32
    b2 = bpk_ref[1:2, :][:, :D]                             # (1, D)   f32

    # h1 = tanh(z @ W1)                                     (N, F)
    h1 = jnp.tanh(jnp.dot(z, w1, preferred_element_type=jnp.float32))
    # s @ h1                                                (N, F)
    sh1 = jnp.dot(s, h1.astype(jnp.bfloat16),
                  preferred_element_type=jnp.float32)
    # h1_1 = tanh((s @ h1) @ W_dec1^T + b1)                 (N, Hp)
    h1_1 = jnp.tanh(
        jnp.dot(sh1.astype(jnp.bfloat16), w11,
                preferred_element_type=jnp.float32) + b1)
    # h1_1 @ W_dec2^T  (W_dec2 stored un-transposed; contract Hp vs Hp)
    acc = jax.lax.dot_general(
        h1_1.astype(jnp.bfloat16), w12,
        dimension_numbers=(((1,), (1,)), ((), ())),
        preferred_element_type=jnp.float32)                 # (N, D)
    # h1_2 = tanh(s @ (h1_1 @ W_dec2^T) + b2)  ==  tanh((s@h1_1)@W2^T + b2)
    o_ref[...] = jnp.tanh(
        jnp.dot(s, acc.astype(jnp.bfloat16),
                preferred_element_type=jnp.float32) + b2)


def prepare_params(w1, w_dec1, b_dec1, w_dec2, b_dec2):
    """One-time parameter preparation (NOT on the per-call forward path).

    PyTorch layout in:  w1 (F, F), w_dec1 (1800, F), b_dec1 (1800,),
                        w_dec2 (D, 1800), b_dec2 (D,).
    Returns: (w1_bf16 (F,F), packed weights (F+D, Hp) bf16, packed biases
    (2, Hp) f32) with hidden zero-padded to a multiple of 128.
    """
    F = w1.shape[0]
    H, F2 = w_dec1.shape
    D, H2 = w_dec2.shape
    assert F2 == F and H2 == H
    Hp = _round_up(H, 128)                      # 1800 -> 1920
    assert D <= Hp

    w1_bf = w1.astype(jnp.bfloat16)                                    # (F, F)
    w11 = jnp.pad(jnp.transpose(w_dec1), ((0, 0), (0, Hp - H)))        # (F, Hp)
    w12 = jnp.pad(w_dec2, ((0, 0), (0, Hp - H)))                       # (D, Hp)
    w_pk = jnp.concatenate([w11, w12], axis=0).astype(jnp.bfloat16)    # (F+D, Hp)
    b_pk = jnp.stack([jnp.pad(b_dec1, (0, Hp - H)),
                      jnp.pad(b_dec2, (0, Hp - D))]).astype(jnp.float32)  # (2, Hp)
    return w1_bf, w_pk, b_pk


@jax.jit
def _decoder_forward_batched(z, s, w1_bf, w_pk, b_pk):
    """z: (B, N, F) f32, s: (B, N, N) f32 -> (B, N, D) f32."""
    B, N, F = z.shape
    Hp = w_pk.shape[1]
    D = w_pk.shape[0] - F

    # Advisory cost hint for the XLA scheduler (tiny, DMA-bound custom call).
    flops = 2 * B * (N * F * F + N * N * F + N * F * Hp + N * Hp * D + N * N * D)
    transcendentals = B * (N * F + N * Hp + N * D)
    bytes_accessed = (4 * (z.size + s.size + b_pk.size + B * N * D)
                      + 2 * (w1_bf.size + w_pk.size))

    return pl.pallas_call(
        decoder_kernel,
        out_shape=jax.ShapeDtypeStruct((B, N, D), jnp.float32),
        grid=(B,),
        in_specs=[
            pl.BlockSpec((None, N, F), lambda b: (b, 0, 0)),   # z   (per graph)
            pl.BlockSpec((None, N, N), lambda b: (b, 0, 0)),   # s   (per graph)
            pl.BlockSpec((F, F), lambda b: (0, 0)),            # W1        (resident)
            pl.BlockSpec((F + D, Hp), lambda b: (0, 0)),       # packed W  (resident)
            pl.BlockSpec((2, Hp), lambda b: (0, 0)),           # packed b  (resident)
        ],
        out_specs=pl.BlockSpec((None, N, D), lambda b: (b, 0, 0)),
        compiler_params=pltpu.CompilerParams(
            dimension_semantics=("parallel",)),
        cost_estimate=pl.CostEstimate(
            flops=flops,
            transcendentals=transcendentals,
            bytes_accessed=bytes_accessed),
    )(z, s, w1_bf, w_pk, b_pk)


def decoder_forward(z, s, params):
    """Forward for a single graph (z (N,F), s (N,N)) or a batch (B,N,F)/(B,N,N)."""
    w1_bf, w_pk, b_pk = params
    if z.ndim == 2:
        return _decoder_forward_batched(z[None], s[None], w1_bf, w_pk, b_pk)[0]
    return _decoder_forward_batched(z, s, w1_bf, w_pk, b_pk)


# ----------------------------- references -----------------------------------

def _reference_f32(z, s, w1, w_dec1, b_dec1, w_dec2, b_dec2):
    """Exact semantics of the PyTorch module, full f32, HIGHEST precision."""
    hp = jax.lax.Precision.HIGHEST
    h1 = jnp.tanh(jnp.dot(z, w1, precision=hp))
    h1_1 = jnp.tanh(jnp.dot(jnp.dot(s, h1, precision=hp), w_dec1.T,
                            precision=hp) + b_dec1)
    return jnp.tanh(jnp.dot(jnp.dot(s, h1_1, precision=hp), w_dec2.T,
                            precision=hp) + b_dec2)


def _reference_matched(z, s, w1_bf, w_pk, b_pk, F, D):
    """Mirrors the kernel numerics (bf16 operands, f32 accumulation)."""
    w11 = w_pk[:F]
    w12 = w_pk[F:F + D]
    b1 = b_pk[0:1, :]
    b2 = b_pk[1:2, :D]
    zb = z.astype(jnp.bfloat16)
    sb = s.astype(jnp.bfloat16)
    h1 = jnp.tanh(jnp.dot(zb, w1_bf, preferred_element_type=jnp.float32))
    sh1 = jnp.dot(sb, h1.astype(jnp.bfloat16),
                  preferred_element_type=jnp.float32)
    h1_1 = jnp.tanh(jnp.dot(sh1.astype(jnp.bfloat16), w11,
                            preferred_element_type=jnp.float32) + b1)
    acc = jax.lax.dot_general(h1_1.astype(jnp.bfloat16), w12,
                              dimension_numbers=(((1,), (1,)), ((), ())),
                              preferred_element_type=jnp.float32)
    return jnp.tanh(jnp.dot(sb, acc.astype(jnp.bfloat16),
                            preferred_element_type=jnp.float32) + b2)


def xavier_uniform(key, shape):
    fan_in, fan_out = shape[1], shape[0]
    limit = (6.0 / (fan_in + fan_out)) ** 0.5
    return jax.random.uniform(key, shape, jnp.float32, -limit, limit)


if __name__ == "__main__":
    # Small synthetic shapes consistent with the module.
    B = 3              # graphs decoded per step (batch grid axis)
    N = 8              # number of samples / graph nodes
    feature_dim = 32
    input_dim = 64
    hidden = HIDDEN    # 1800, fixed by the module definition

    key = jax.random.PRNGKey(0)
    k_z, k_s, k_w1, k_w11, k_b11, k_w12, k_b12 = jax.random.split(key, 7)

    z = jax.random.normal(k_z, (B, N, feature_dim), jnp.float32)
    s = jax.random.normal(k_s, (B, N, N), jnp.float32)

    # Deterministic parameter init (xavier-uniform style, as in __init__),
    # in PyTorch layout.
    w1 = xavier_uniform(k_w1, (feature_dim, feature_dim))        # weight_1
    w_dec1 = xavier_uniform(k_w11, (hidden, feature_dim))        # dec1_1.weight
    b_dec1 = jax.random.uniform(k_b11, (hidden,), jnp.float32,
                                -0.05, 0.05)                     # dec1_1.bias
    w_dec2 = xavier_uniform(k_w12, (input_dim, hidden))          # dec1_2.weight
    b_dec2 = jax.random.uniform(k_b12, (input_dim,), jnp.float32,
                                -0.05, 0.05)                     # dec1_2.bias

    # One-time weight preparation, then the jitted Pallas forward.
    params = prepare_params(w1, w_dec1, b_dec1, w_dec2, b_dec2)
    out = decoder_forward(z, s, params)
    out = jax.block_until_ready(out)
    assert out.shape == (B, N, input_dim)

    # Single-graph path is consistent with the batched path.
    out0 = jax.block_until_ready(decoder_forward(z[0], s[0], params))
    assert out0.shape == (N, input_dim)
    assert jnp.allclose(out0, out[0], atol=1e-5, rtol=1e-5)

    # Reference 1: identical bf16-operand / f32-accumulation math
    # (validates the kernel implementation).
    w1_bf, w_pk, b_pk = params
    ref_matched = jax.vmap(
        lambda zi, si: _reference_matched(zi, si, w1_bf, w_pk, b_pk,
                                          feature_dim, input_dim))(z, s)
    assert jnp.allclose(out, ref_matched, atol=5e-3, rtol=5e-3)

    # Reference 2: full f32 original-module semantics (validates fidelity
    # after the deliberate bf16 compression of weights/activations).
    ref_f32 = jax.vmap(
        lambda zi, si: _reference_f32(zi, si, w1, w_dec1, b_dec1,
                                      w_dec2, b_dec2))(z, s)
    assert jnp.allclose(out, ref_f32, atol=5e-2, rtol=5e-2)

    print("KERNEL_OK")
</pallas_src>

<mosaic_0001>
module attributes {stable_mosaic.version = 11 : i64} {
  func.func @decoder_kernel(%arg0: i32, %arg1: memref<1x8x32xf32, #tpu.memory_space<vmem>>, %arg2: memref<1x8x8xf32, #tpu.memory_space<vmem>>, %arg3: memref<32x32xbf16, #tpu.memory_space<vmem>>, %arg4: memref<96x1920xbf16, #tpu.memory_space<vmem>>, %arg5: memref<2x1920xf32, #tpu.memory_space<vmem>>, %arg6: memref<1x8x64xf32, #tpu.memory_space<vmem>>) attributes {dimension_semantics = [#tpu.dimension_semantics<parallel>], iteration_bounds = array<i64: 3>, scalar_prefetch = 0 : i64, scratch_operands = 0 : i64, tpu.core_type = #tpu.core_type<tc>, window_params = [{transform_indices = @transform_0, window_bounds = array<i64: 1, 8, 32>}, {transform_indices = @transform_1, window_bounds = array<i64: 1, 8, 8>}, {pipeline_mode = #tpu.pipeline_mode<synchronous>, transform_indices = @transform_2, window_bounds = array<i64: 32, 32>}, {pipeline_mode = #tpu.pipeline_mode<synchronous>, transform_indices = @transform_3, window_bounds = array<i64: 96, 1920>}, {pipeline_mode = #tpu.pipeline_mode<synchronous>, transform_indices = @transform_4, window_bounds = array<i64: 2, 1920>}, {transform_indices = @transform_5, window_bounds = array<i64: 1, 8, 64>}]} {
    %c0 = arith.constant 0 : index
    %c0_0 = arith.constant 0 : index
    %c0_1 = arith.constant 0 : index
    %0 = vector.load %arg1[%c0, %c0_0, %c0_1] : memref<1x8x32xf32, #tpu.memory_space<vmem>>, vector<1x8x32xf32>
    %1 = vector.shape_cast %0 : vector<1x8x32xf32> to vector<8x32xf32>
    %2 = arith.truncf %1 : vector<8x32xf32> to vector<8x32xbf16>
    %c0_2 = arith.constant 0 : index
    %c0_3 = arith.constant 0 : index
    %c0_4 = arith.constant 0 : index
    %3 = vector.load %arg2[%c0_2, %c0_3, %c0_4] : memref<1x8x8xf32, #tpu.memory_space<vmem>>, vector<1x8x8xf32>
    %4 = vector.shape_cast %3 : vector<1x8x8xf32> to vector<8x8xf32>
    %5 = arith.truncf %4 : vector<8x8xf32> to vector<8x8xbf16>
    %c0_5 = arith.constant 0 : index
    %c0_6 = arith.constant 0 : index
    %6 = vector.load %arg3[%c0_5, %c0_6] : memref<32x32xbf16, #tpu.memory_space<vmem>>, vector<32x32xbf16>
    %c0_7 = arith.constant 0 : index
    %c0_8 = arith.constant 0 : index
    %7 = vector.load %arg4[%c0_7, %c0_8] : memref<96x1920xbf16, #tpu.memory_space<vmem>>, vector<32x1920xbf16>
    %c32 = arith.constant 32 : index
    %c0_9 = arith.constant 0 : index
    %8 = vector.load %arg4[%c32, %c0_9] : memref<96x1920xbf16, #tpu.memory_space<vmem>>, vector<64x1920xbf16>
    %c0_10 = arith.constant 0 : index
    %c0_11 = arith.constant 0 : index
    %9 = vector.load %arg5[%c0_10, %c0_11] : memref<2x1920xf32, #tpu.memory_space<vmem>>, vector<1x1920xf32>
    %c1 = arith.constant 1 : index
    %c0_12 = arith.constant 0 : index
    %10 = vector.load %arg5[%c1, %c0_12] : memref<2x1920xf32, #tpu.memory_space<vmem>>, vector<1x1920xf32>
    %11 = vector.extract_strided_slice %10 {offsets = [0, 0], sizes = [1, 64], strides = [1, 1]} : vector<1x1920xf32> to vector<1x64xf32>
    %cst = arith.constant dense<0.000000e+00> : vector<8x32xf32>
    %12 = tpu.matmul %2, %6, %cst {dimension_numbers = #tpu.dot_dimension_numbers<[1], [0], [0], [1], [0, 0, 1, 1], [], []>} : vector<8x32xbf16>, vector<32x32xbf16>, vector<8x32xf32> -> vector<8x32xf32>
    %13 = math.tanh %12 : vector<8x32xf32>
    %14 = arith.truncf %13 : vector<8x32xf32> to vector<8x32xbf16>
    %cst_13 = arith.constant dense<0.000000e+00> : vector<8x32xf32>
    %15 = tpu.matmul %5, %14, %cst_13 {dimension_numbers = #tpu.dot_dimension_numbers<[1], [0], [0], [1], [0, 0, 1, 1], [], []>} : vector<8x8xbf16>, vector<8x32xbf16>, vector<8x32xf32> -> vector<8x32xf32>
    %16 = arith.truncf %15 : vector<8x32xf32> to vector<8x32xbf16>
    %cst_14 = arith.constant dense<0.000000e+00> : vector<8x1920xf32>
    %17 = tpu.matmul %16, %7, %cst_14 {dimension_numbers = #tpu.dot_dimension_numbers<[1], [0], [0], [1], [0, 0, 1, 1], [], []>} : vector<8x32xbf16>, vector<32x1920xbf16>, vector<8x1920xf32> -> vector<8x1920xf32>
    %18 = vector.broadcast %9 : vector<1x1920xf32> to vector<8x1920xf32>
    %19 = arith.addf %17, %18 : vector<8x1920xf32>
    %20 = math.tanh %19 : vector<8x1920xf32>
    %21 = arith.truncf %20 : vector<8x1920xf32> to vector<8x1920xbf16>
    %cst_15 = arith.constant dense<0.000000e+00> : vector<8x64xf32>
    %22 = tpu.matmul %21, %8, %cst_15 {dimension_numbers = #tpu.dot_dimension_numbers<[1], [1], [0], [0], [0, 0, 1, 0], [], []>} : vector<8x1920xbf16>, vector<64x1920xbf16>, vector<8x64xf32> -> vector<8x64xf32>
    %23 = arith.truncf %22 : vector<8x64xf32> to vector<8x64xbf16>
    %cst_16 = arith.constant dense<0.000000e+00> : vector<8x64xf32>
    %24 = tpu.matmul %5, %23, %cst_16 {dimension_numbers = #tpu.dot_dimension_numbers<[1], [0], [0], [1], [0, 0, 1, 1], [], []>} : vector<8x8xbf16>, vector<8x64xbf16>, vector<8x64xf32> -> vector<8x64xf32>
    %25 = vector.broadcast %11 : vector<1x64xf32> to vector<8x64xf32>
    %26 = arith.addf %24, %25 : vector<8x64xf32>
    %27 = math.tanh %26 : vector<8x64xf32>
    %c0_17 = arith.constant 0 : index
    %c0_18 = arith.constant 0 : index
    %c0_19 = arith.constant 0 : index
    %28 = vector.load %arg6[%c0_17, %c0_18, %c0_19] : memref<1x8x64xf32, #tpu.memory_space<vmem>>, vector<1x8x64xf32>
    %29 = vector.shape_cast %28 : vector<1x8x64xf32> to vector<8x64xf32>
    %30 = vector.shape_cast %27 : vector<8x64xf32> to vector<1x8x64xf32>
    tpu.vector_store %arg6[%c0_17, %c0_18, %c0_19], %30 {strides = array<i32>} : memref<1x8x64xf32, #tpu.memory_space<vmem>>, vector<1x8x64xf32>,
    return
  }
  func.func @transform_0(%arg0: i32) -> (i32, i32, i32) {
    %c0_i32 = arith.constant 0 : i32
    %c0_i32_0 = arith.constant 0 : i32
    %c0_i32_1 = arith.constant 0 : i32
    return %arg0, %c0_i32, %c0_i32_0 : i32, i32, i32
  }
  func.func @transform_1(%arg0: i32) -> (i32, i32, i32) {
    %c0_i32 = arith.constant 0 : i32
    %c0_i32_0 = arith.constant 0 : i32
    %c0_i32_1 = arith.constant 0 : i32
    return %arg0, %c0_i32, %c0_i32_0 : i32, i32, i32
  }
  func.func @transform_2(%arg0: i32) -> (i32, i32) {
    %c0_i32 = arith.constant 0 : i32
    %c0_i32_0 = arith.constant 0 : i32
    %c0_i32_1 = arith.constant 0 : i32
    return %c0_i32, %c0_i32_0 : i32, i32
  }
  func.func @transform_3(%arg0: i32) -> (i32, i32) {
    %c0_i32 = arith.constant 0 : i32
    %c0_i32_0 = arith.constant 0 : i32
    %c0_i32_1 = arith.constant 0 : i32
    return %c0_i32, %c0_i32_0 : i32, i32
  }
  func.func @transform_4(%arg0: i32) -> (i32, i32) {
    %c0_i32 = arith.constant 0 : i32
    %c0_i32_0 = arith.constant 0 : i32
    %c0_i32_1 = arith.constant 0 : i32
    return %c0_i32, %c0_i32_0 : i32, i32
  }
  func.func @transform_5(%arg0: i32) -> (i32, i32, i32) {
    %c0_i32 = arith.constant 0 : i32
    %c0_i32_0 = arith.constant 0 : i32
    %c0_i32_1 = arith.constant 0 : i32
    return %arg0, %c0_i32, %c0_i32_0 : i32, i32, i32
  }
}

</mosaic_0001>

<llo_original>
// kernel: _decoder_forward_batched.1
$region0: #{_decoder_forward_batched.1}
  #allocation0 [shape = 'u32[]', space=smem, size = 0x4, offset = 0x4, fixed_abs, tag = 'smem constant byte address 0x4 - core index']
  #allocation1 [shape = 'u32[144,128]{1,0:T(1,128)}', space=vmem, size = 0x12000, scoped, tag = 'internal scratch']
  %s0 = inlined_call_operand.hbm [shape: f32[3,8,32], index: 0, kind: input, shape index: {}]
  %s1 = inlined_call_operand.hbm [shape: f32[3,8,8], index: 1, kind: input, shape index: {}]
  %s2 = inlined_call_operand.hbm [shape: bf16[32,32], index: 2, kind: input, shape index: {}]
  %s3 = inlined_call_operand.hbm [shape: bf16[96,1920], index: 3, kind: input, shape index: {}]
  %s4 = inlined_call_operand.hbm [shape: f32[2,1920], index: 4, kind: input, shape index: {}]
  %s5 = inlined_call_operand.hbm [shape: f32[3,8,64], index: 5, kind: output, shape index: {}]
  %s6 = sld [smem:[#allocation0]]
  $region73: #{_decoder_forward_batched.1} parent=0
    _
  %s8 = ssub.s32 1, %s6
  %s9 = scalar_select 0, %s8, %s6
  $region1: #{_decoder_forward_batched.1} parent=0
    #allocation2 [shape = 'u8[8192]{0}', space=vmem, size = 0x2000, scoped, tag = 'input window, operand 0']
    #allocation3 [shape = 's32[2]{0}', space=sflag, size = 0x8, scoped, tag = 'scoped memory for _decoder_forward_batched.1']
    #allocation4 [shape = 's32[2]{0}', space=sflag, size = 0x8, scoped, tag = 'scoped memory for _decoder_forward_batched.1']
    #allocation5 [shape = 'u8[8192]{0}', space=vmem, size = 0x2000, scoped, tag = 'input window, operand 1']
    #allocation6 [shape = 's32[2]{0}', space=sflag, size = 0x8, scoped, tag = 'scoped memory for _decoder_forward_batched.1']
    #allocation7 [shape = 'u8[8192]{0}', space=vmem, size = 0x2000, scoped, tag = 'input window, operand 2, single buffered']
    #allocation8 [shape = 'u8[368640]{0}', space=vmem, size = 0x5a000, scoped, tag = 'input window, operand 3, single buffered']
    #allocation9 [shape = 's32[1]{0}', space=sflag, size = 0x4, scoped, tag = 'scoped memory for _decoder_forward_batched.1']
    #allocation10 [shape = 'u8[15360]{0}', space=vmem, size = 0x3c00, scoped, tag = 'input window, operand 4, single buffered']
    #allocation11 [shape = 'u8[8192]{0}', space=vmem, size = 0x2000, scoped, tag = 'output window, operand 0']
    %10 = vsyncpa [#allocation3], 0
    %s11 = scalar_lea.sflag [#allocation3], 1
    %12 = vsyncpa %s11, 0
    %13 = vsyncpa [#allocation6], 0
    %s14 = scalar_lea.sflag [#allocation6], 1
    %15 = vsyncpa %s14, 0
    %16 = vsyncpa [#allocation9], 0
    %17 = vsyncpa [#allocation4], 0
    %s18 = scalar_lea.sflag [#allocation4], 1
    %19 = vsyncpa %s18, 0
    loop: start=0, step=1, limit=5
    $region2: #{_decoder_forward_batched.1} parent=1 // loop_pre_header
      _
    $region3: #{_decoder_forward_batched.1} parent=1 // loop_header
      %s21 = sphi 0, %s25
      %p22 = scmp.ge.s32.totalorder %s21, 5
      %s31 = sphi 0, %s33
      %s34 = sphi 0, %s31
      %s35 = sphi 0, %s34
      %s51 = sphi 0, %s35
      %s57 = sphi 0, %s59
      %s60 = sphi 0, %s57
      %s61 = sphi 0, %s60
      %s77 = sphi 0, %s61
      %s81 = sphi 0, %s81
      %s83 = sphi 0, %s81
      %s84 = sphi 0, %s83
      %s98 = sphi 0, %s84
      %s102 = sphi 0, %s102
      %s104 = sphi 0, %s102
      %s105 = sphi 0, %s104
      %s119 = sphi 0, %s105
      %s123 = sphi 0, %s123
      %s125 = sphi 0, %s123
      %s126 = sphi 0, %s125
      %s140 = sphi 0, %s126
      %s146 = sphi 0, %s148
      %s149 = sphi 0, %s146
      %s150 = sphi 0, %s149
      %s166 = sphi 0, %s150
    $region4: #{_decoder_forward_batched.1} parent=1 // loop_header_branch
      %24 = sbr.rel (%p22) target = $region8
    $region5: #{_decoder_forward_batched.1} parent=1 // loop_body
      %s26 = ssub.s32 %s21, 1
      %s27 = ssub.s32 %s21, 2
      %s28 = sadd.s32 %s21, 1
      %s29 = ssub.s32 %s21, %s28
      %p30 = scmp.eq.s32.totalorder %s29, 0
      %s32 = sadd.s32 %s31, 1
      %s33 = scalar_select %p30, %s31, %s32
      %p36 = pneg %p30
      %p37 = scmp.eq.s32.totalorder %s21, 2
      %p38 = por %p36, %p37
      %p39 = scmp.ne.s32.totalorder %s31, %s34
      %p40 = scmp.eq.s32.totalorder %s21, 0
      %p41 = por %p39, %p40
      %p42 = scmp.ne.s32.totalorder %s31, %s34
      %p43 = scmp.eq.s32.totalorder %s26, 2
      %p44 = por %p42, %p43
      %p45 = scmp.ne.s32.totalorder %s34, %s35
      %p46 = scmp.eq.s32.totalorder %s26, 0
      %p47 = por %p45, %p46
      %p48 = scmp.ne.s32.totalorder %s34, %s35
      %p49 = scmp.eq.s32.totalorder %s27, 2
      %p50 = por %p48, %p49
      %p52 = scmp.ne.s32.totalorder %s35, %s51
      %p53 = scmp.eq.s32.totalorder %s27, 0
      %p54 = por %p52, %p53
      %s55 = ssub.s32 %s21, %s28
      %p56 = scmp.eq.s32.totalorder %s55, 0
      %s58 = sadd.s32 %s57, 1
      %s59 = scalar_select %p56, %s57, %s58
      %p62 = pneg %p56
      %p63 = scmp.eq.s32.totalorder %s21, 2
      %p64 = por %p62, %p63
      %p65 = scmp.ne.s32.totalorder %s57, %s60
      %p66 = scmp.eq.s32.totalorder %s21, 0
      %p67 = por %p65, %p66
      %p68 = scmp.ne.s32.totalorder %s57, %s60
      %p69 = scmp.eq.s32.totalorder %s26, 2
      %p70 = por %p68, %p69
      %p71 = scmp.ne.s32.totalorder %s60, %s61
      %p72 = scmp.eq.s32.totalorder %s26, 0
      %p73 = por %p71, %p72
      %p74 = scmp.ne.s32.totalorder %s60, %s61
      %p75 = scmp.eq.s32.totalorder %s27, 2
      %p76 = por %p74, %p75
      %p78 = scmp.ne.s32.totalorder %s61, %s77
      %p79 = scmp.eq.s32.totalorder %s27, 0
      %p80 = por %p78, %p79
      %s82 = sadd.s32 %s81, 1
      %p85 = scmp.eq.s32.totalorder %s21, 2
      %p86 = scmp.ne.s32.totalorder %s81, %s83
      %p87 = scmp.eq.s32.totalorder %s21, 0
      %p88 = por %p86, %p87
      %p89 = scmp.ne.s32.totalorder %s81, %s83
      %p90 = scmp.eq.s32.totalorder %s26, 2
      %p91 = por %p89, %p90
      %p92 = scmp.ne.s32.totalorder %s83, %s84
      %p93 = scmp.eq.s32.totalorder %s26, 0
      %p94 = por %p92, %p93
      %p95 = scmp.ne.s32.totalorder %s83, %s84
      %p96 = scmp.eq.s32.totalorder %s27, 2
      %p97 = por %p95, %p96
      %p99 = scmp.ne.s32.totalorder %s84, %s98
      %p100 = scmp.eq.s32.totalorder %s27, 0
      %p101 = por %p99, %p100
      %s103 = sadd.s32 %s102, 1
      %p106 = scmp.eq.s32.totalorder %s21, 2
      %p107 = scmp.ne.s32.totalorder %s102, %s104
      %p108 = scmp.eq.s32.totalorder %s21, 0
      %p109 = por %p107, %p108
      %p110 = scmp.ne.s32.totalorder %s102, %s104
      %p111 = scmp.eq.s32.totalorder %s26, 2
      %p112 = por %p110, %p111
      %p113 = scmp.ne.s32.totalorder %s104, %s105
      %p114 = scmp.eq.s32.totalorder %s26, 0
      %p115 = por %p113, %p114
      %p116 = scmp.ne.s32.totalorder %s104, %s105
      %p117 = scmp.eq.s32.totalorder %s27, 2
      %p118 = por %p116, %p117
      %p120 = scmp.ne.s32.totalorder %s105, %s119
      %p121 = scmp.eq.s32.totalorder %s27, 0
      %p122 = por %p120, %p121
      %s124 = sadd.s32 %s123, 1
      %p127 = scmp.eq.s32.totalorder %s21, 2
      %p128 = scmp.ne.s32.totalorder %s123, %s125
      %p129 = scmp.eq.s32.totalorder %s21, 0
      %p130 = por %p128, %p129
      %p131 = scmp.ne.s32.totalorder %s123, %s125
      %p132 = scmp.eq.s32.totalorder %s26, 2
      %p133 = por %p131, %p132
      %p134 = scmp.ne.s32.totalorder %s125, %s126
      %p135 = scmp.eq.s32.totalorder %s26, 0
      %p136 = por %p134, %p135
      %p137 = scmp.ne.s32.totalorder %s125, %s126
      %p138 = scmp.eq.s32.totalorder %s27, 2
      %p139 = por %p137, %p138
      %p141 = scmp.ne.s32.totalorder %s126, %s140
      %p142 = scmp.eq.s32.totalorder %s27, 0
      %p143 = por %p141, %p142
      %s144 = ssub.s32 %s21, %s28
      %p145 = scmp.eq.s32.totalorder %s144, 0
      %s147 = sadd.s32 %s146, 1
      %s148 = scalar_select %p145, %s146, %s147
      %p151 = pneg %p145
      %p152 = scmp.eq.s32.totalorder %s21, 2
      %p153 = por %p151, %p152
      %p154 = scmp.ne.s32.totalorder %s146, %s149
      %p155 = scmp.eq.s32.totalorder %s21, 0
      %p156 = por %p154, %p155
      %p157 = scmp.ne.s32.totalorder %s146, %s149
      %p158 = scmp.eq.s32.totalorder %s26, 2
      %p159 = por %p157, %p158
      %p160 = scmp.ne.s32.totalorder %s149, %s150
      %p161 = scmp.eq.s32.totalorder %s26, 0
      %p162 = por %p160, %p161
      %p163 = scmp.ne.s32.totalorder %s149, %s150
      %p164 = scmp.eq.s32.totalorder %s27, 2
      %p165 = por %p163, %p164
      %p167 = scmp.ne.s32.totalorder %s150, %s166
      %p168 = scmp.eq.s32.totalorder %s27, 0
      %p169 = por %p167, %p168
      %p170 = scmp.le.s32.totalorder 1, %s21
      %p171 = scmp.lt.s32.totalorder %s21, 4
      %p172 = pnand %p170, %p171
      %p173 = pneg %p172
      // Predicated region
      $region9: #{_decoder_forward_batched.1} parent=5 // pred_check
        _
      $region10: #{_decoder_forward_batched.1} parent=5 // pred_check_branch
        %175 = sbr.rel (%p172) target = $region12
      $region11: #{_decoder_forward_batched.1} parent=5 // pred_region
        %s176 = ssub.s32 %s21, 1
        // Predicated region
        $region13: #{_decoder_forward_batched.1} parent=11 // pred_check
          %p177 = pneg %p94
        $region14: #{_decoder_forward_batched.1} parent=11 // pred_check_branch
          %179 = sbr.rel (%p177) target = $region16
        $region15: #{_decoder_forward_batched.1} parent=11 // pred_region
          %s181 = ssub.s32 256, 256
          %182 = vsyncadd [#allocation6], %s181
          %s183 = sshll.u32 [#allocation7], 4
          %s184 = int_to_ptr.vmem [resolvable:$true] %s183
          %189 = dma.hbm_to_vmem [thread:$0]  %s2, 256, %s184, [#allocation6], 64, 64, 4
        $region16: #{_decoder_forward_batched.1} parent=11 // pred_fallthru
          _
        // Predicated region
        $region17: #{_decoder_forward_batched.1} parent=11 // pred_check
          %p190 = pneg %p115
        $region18: #{_decoder_forward_batched.1} parent=11 // pred_check_branch
          %192 = sbr.rel (%p190) target = $region20
        $region19: #{_decoder_forward_batched.1} parent=11 // pred_region
          %s194 = ssub.s32 11520, 11520
          %195 = vsyncadd [#allocation9], %s194
          %s196 = sshll.u32 [#allocation8], 4
          %s197 = int_to_ptr.vmem [resolvable:$true] %s196
          %202 = dma.hbm_to_vmem [thread:$0]  %s3, 11520, %s197, [#allocation9], 960, 960, 60
        $region20: #{_decoder_forward_batched.1} parent=11 // pred_fallthru
          _
        // Predicated region
        $region21: #{_decoder_forward_batched.1} parent=11 // pred_check
          %p203 = pneg %p136
        $region22: #{_decoder_forward_batched.1} parent=11 // pred_check_branch
          %205 = sbr.rel (%p203) target = $region24
        $region23: #{_decoder_forward_batched.1} parent=11 // pred_region
          %s207 = ssub.s32 480, 480
          %208 = vsyncadd [#allocation9], %s207
          %s210 = sshll.u32 [#allocation10], 4
          %s211 = int_to_ptr.vmem [resolvable:$true] %s210
          %213 = dma.hbm_to_vmem [thread:$0]  %s4, 480, %s211, [#allocation9]
        $region24: #{_decoder_forward_batched.1} parent=11 // pred_fallthru
          _
      $region12: #{_decoder_forward_batched.1} parent=5 // pred_fallthru
        _
      %p214 = scmp.lt.s32.totalorder %s21, 3
      // Predicated region
      $region25: #{_decoder_forward_batched.1} parent=5 // pred_check
        %p215 = pneg %p214
      $region26: #{_decoder_forward_batched.1} parent=5 // pred_check_branch
        %217 = sbr.rel (%p215) target = $region28
      $region27: #{_decoder_forward_batched.1} parent=5 // pred_region
        // Predicated region
        $region29: #{_decoder_forward_batched.1} parent=27 // pred_check
          %p218 = pneg %p41
        $region30: #{_decoder_forward_batched.1} parent=27 // pred_check_branch
          %220 = sbr.rel (%p218) target = $region32
        $region31: #{_decoder_forward_batched.1} parent=27 // pred_region
          %s221 = sand.u32 %s31, 1
          %s222 = scalar_lea.sflag [#allocation3], %s221
          %s223 = sand.u32 %s31, 1
          %s224 = smul.addr %s223, 8
          %s225 = scalar_lea.vmem [#allocation2], %s224
          %s227 = ssub.s32 128, 128
          %228 = vsyncadd %s222, %s227
          %s229 = smul.addr %s21, 128
          %s230 = scalar_lea.hbm %s0, %s229
          %s232 = sshll.u32 %s225, 4
          %s233 = int_to_ptr.vmem [resolvable:$true] %s232
          %235 = dma.hbm_to_vmem [thread:$0]  %s230, 128, %s233, %s222
        $region32: #{_decoder_forward_batched.1} parent=27 // pred_fallthru
          _
        // Predicated region
        $region33: #{_decoder_forward_batched.1} parent=27 // pred_check
          %p236 = pneg %p67
        $region34: #{_decoder_forward_batched.1} parent=27 // pred_check_branch
          %238 = sbr.rel (%p236) target = $region36
        $region35: #{_decoder_forward_batched.1} parent=27 // pred_region
          %s239 = sand.u32 %s21, 1
          %s240 = scalar_lea.sflag [#allocation6], %s239
          %s241 = sand.u32 %s57, 1
          %s242 = smul.addr %s241, 8
          %s243 = scalar_lea.vmem [#allocation5], %s242
          %s245 = ssub.s32 128, 128
          %246 = vsyncadd %s240, %s245
          %s247 = smul.addr %s21, 128
          %s248 = scalar_lea.hbm %s1, %s247
          %s250 = sshll.u32 %s243, 4
          %s251 = int_to_ptr.vmem [resolvable:$true] %s250
          %253 = dma.hbm_to_vmem [thread:$0]  %s248, 128, %s251, %s240
        $region36: #{_decoder_forward_batched.1} parent=27 // pred_fallthru
          _
      $region28: #{_decoder_forward_batched.1} parent=5 // pred_fallthru
        _
      %p254 = scmp.le.s32.totalorder 1, %s21
      %p255 = scmp.lt.s32.totalorder %s21, 4
      %p256 = pnand %p254, %p255
      %p257 = pneg %p256
      // Predicated region
      $region37: #{_decoder_forward_batched.1} parent=5 // pred_check
        _
      $region38: #{_decoder_forward_batched.1} parent=5 // pred_check_branch
        %259 = sbr.rel (%p256) target = $region40
      $region39: #{_decoder_forward_batched.1} parent=5 // pred_region
        %s260 = ssub.s32 %s21, 1
        %s261 = sand.u32 %s34, 1
        %s262 = scalar_lea.sflag [#allocation3], %s261
        %s263 = sand.u32 %s34, 1
        %s264 = smul.addr %s263, 8
        %s265 = scalar_lea.vmem [#allocation2], %s264
        // Predicated region
        $region41: #{_decoder_forward_batched.1} parent=39 // pred_check
          %p266 = pneg %p47
        $region42: #{_decoder_forward_batched.1} parent=39 // pred_check_branch
          %268 = sbr.rel (%p266) target = $region44
        $region43: #{_decoder_forward_batched.1} parent=39 // pred_region
          %269 = dma.done %s262, 128
        $region44: #{_decoder_forward_batched.1} parent=39 // pred_fallthru
          _
        %s270 = sand.u32 %s26, 1
        %s271 = scalar_lea.sflag [#allocation6], %s270
        %s272 = sand.u32 %s60, 1
        %s273 = smul.addr %s272, 8
        %s274 = scalar_lea.vmem [#allocation5], %s273
        // Predicated region
        $region45: #{_decoder_forward_batched.1} parent=39 // pred_check
          %p275 = pneg %p73
        $region46: #{_decoder_forward_batched.1} parent=39 // pred_check_branch
          %277 = sbr.rel (%p275) target = $region48
        $region47: #{_decoder_forward_batched.1} parent=39 // pred_region
          %278 = dma.done %s271, 128
        $region48: #{_decoder_forward_batched.1} parent=39 // pred_fallthru
          _
        // Predicated region
        $region49: #{_decoder_forward_batched.1} parent=39 // pred_check
          %p279 = pneg %p94
        $region50: #{_decoder_forward_batched.1} parent=39 // pred_check_branch
          %281 = sbr.rel (%p279) target = $region52
        $region51: #{_decoder_forward_batched.1} parent=39 // pred_region
          %282 = dma.done [#allocation6], 256
        $region52: #{_decoder_forward_batched.1} parent=39 // pred_fallthru
          _
        // Predicated region
        $region53: #{_decoder_forward_batched.1} parent=39 // pred_check
          %p283 = pneg %p115
        $region54: #{_decoder_forward_batched.1} parent=39 // pred_check_branch
          %285 = sbr.rel (%p283) target = $region56
        $region55: #{_decoder_forward_batched.1} parent=39 // pred_region
          %286 = dma.done [#allocation9], 11520
        $region56: #{_decoder_forward_batched.1} parent=39 // pred_fallthru
          _
        // Predicated region
        $region57: #{_decoder_forward_batched.1} parent=39 // pred_check
          %p287 = pneg %p136
        $region58: #{_decoder_forward_batched.1} parent=39 // pred_check_branch
          %289 = sbr.rel (%p287) target = $region60
        $region59: #{_decoder_forward_batched.1} parent=39 // pred_region
          %290 = dma.done [#allocation9], 480
        $region60: #{_decoder_forward_batched.1} parent=39 // pred_fallthru
          _
        %s291 = sand.u32 %s34, 1
        %s292 = scalar_lea.sflag [#allocation3], %s291
        %s293 = sand.u32 %s34, 1
        %s294 = smul.addr %s293, 8
        %s295 = scalar_lea.vmem [#allocation2], %s294
        %p296 = pneg %p47
        %p297 = pneg %p44
        %s298 = sand.u32 %s26, 1
        %s299 = scalar_lea.sflag [#allocation6], %s298
        %s300 = sand.u32 %s60, 1
        %s301 = smul.addr %s300, 8
        %s302 = scalar_lea.vmem [#allocation5], %s301
        %p303 = pneg %p73
        %p304 = pneg %p70
        %p305 = pneg %p94
        %p306 = pneg %p91
        %p307 = pneg %p115
        %p308 = pneg %p112
        %p309 = pneg %p136
        %p310 = pneg %p133
        %p311 = pneg %p162
        %p312 = pneg %p159
        %s313 = sand.u32 %s149, 1
        %s314 = scalar_lea.sflag [#allocation4], %s313
        %s315 = sand.u32 %s149, 1
        %s316 = smul.addr %s315, 8
        %s317 = scalar_lea.vmem [#allocation11], %s316
        %v319 = vld [vmem:[%s265] sm:$0xff]
        %v320 = vpack.c.bf16 %v319, %v319
        %v321 = vld [vmem:[%s274] sm:$0xff]
        %v322 = vpack.c.bf16 %v321, %v321
        %v323 = vld [vmem:[#allocation7] sm:$0xf]
        %v324 = vld [vmem:[#allocation7 + $0x4] sm:$0xf]
        %v325 = vld [vmem:[#allocation7 + $0x8] sm:$0xf]
        %v326 = vld [vmem:[#allocation7 + $0xc] sm:$0xf]
        %v327 = vld [vmem:[#allocation8] sm:$0xff]
        %v328 = vld [vmem:[#allocation8 + $0x8] sm:$0xff]
        %v329 = vld [vmem:[#allocation8 + $0x10] sm:$0xff]
        %v330 = vld [vmem:[#allocation8 + $0x18] sm:$0xff]
        %v331 = vld [vmem:[#allocation8 + $0x20] sm:$0xff]
        %v332 = vld [vmem:[#allocation8 + $0x28] sm:$0xff]
        %v333 = vld [vmem:[#allocation8 + $0x30] sm:$0xff]
        %v334 = vld [vmem:[#allocation8 + $0x38] sm:$0xf]
        %v335 = vld [vmem:[#allocation8 + $0x3c] sm:$0xff]
        %v336 = vld [vmem:[#allocation8 + $0x44] sm:$0xff]
        %v337 = vld [vmem:[#allocation8 + $0x4c] sm:$0xff]
        %v338 = vld [vmem:[#allocation8 + $0x54] sm:$0xff]
        %v339 = vld [vmem:[#allocation8 + $0x5c] sm:$0xff]
        %v340 = vld [vmem:[#allocation8 + $0x64] sm:$0xff]
        %v341 = vld [vmem:[#allocation8 + $0x6c] sm:$0xff]
        %v342 = vld [vmem:[#allocation8 + $0x74] sm:$0xf]
        %v343 = vld [vmem:[#allocation8 + $0x78] sm:$0xff]
        %v344 = vld [vmem:[#allocation8 + $0x80] sm:$0xff]
        %v345 = vld [vmem:[#allocation8 + $0x88] sm:$0xff]
        %v346 = vld [vmem:[#allocation8 + $0x90] sm:$0xff]
        %v347 = vld [vmem:[#allocation8 + $0x98] sm:$0xff]
        %v348 = vld [vmem:[#allocation8 + $0xa0] sm:$0xff]
        %v349 = vld [vmem:[#allocation8 + $0xa8] sm:$0xff]
        %v350 = vld [vmem:[#allocation8 + $0xb0] sm:$0xf]
        %v351 = vld [vmem:[#allocation8 + $0xb4] sm:$0xff]
        %v352 = vld [vmem:[#allocation8 + $0xbc] sm:$0xff]
        %v353 = vld [vmem:[#allocation8 + $0xc4] sm:$0xff]
        %v354 = vld [vmem:[#allocation8 + $0xcc] sm:$0xff]
        %v355 = vld [vmem:[#allocation8 + $0xd4] sm:$0xff]
        %v356 = vld [vmem:[#allocation8 + $0xdc] sm:$0xff]
        %v357 = vld [vmem:[#allocation8 + $0xe4] sm:$0xff]
        %v358 = vld [vmem:[#allocation8 + $0xec] sm:$0xf]
        %v359 = vld [vmem:[#allocation8 + $0xf0] sm:$0xff]
        %v360 = vld [vmem:[#allocation8 + $0xf8] sm:$0xff]
        %v361 = vld [vmem:[#allocation8 + $0x100] sm:$0xff]
        %v362 = vld [vmem:[#allocation8 + $0x108] sm:$0xff]
        %v363 = vld [vmem:[#allocation8 + $0x110] sm:$0xff]
        %v364 = vld [vmem:[#allocation8 + $0x118] sm:$0xff]
        %v365 = vld [vmem:[#allocation8 + $0x120] sm:$0xff]
        %v366 = vld [vmem:[#allocation8 + $0x128] sm:$0xf]
        %v367 = vld [vmem:[#allocation8 + $0x12c] sm:$0xff]
        %v368 = vld [vmem:[#allocation8 + $0x134] sm:$0xff]
        %v369 = vld [vmem:[#allocation8 + $0x13c] sm:$0xff]
        %v370 = vld [vmem:[#allocation8 + $0x144] sm:$0xff]
        %v371 = vld [vmem:[#allocation8 + $0x14c] sm:$0xff]
        %v372 = vld [vmem:[#allocation8 + $0x154] sm:$0xff]
        %v373 = vld [vmem:[#allocation8 + $0x15c] sm:$0xff]
        %v374 = vld [vmem:[#allocation8 + $0x164] sm:$0xf]
        %v375 = vld [vmem:[#allocation8 + $0x168] sm:$0xff]
        %v376 = vld [vmem:[#allocation8 + $0x170] sm:$0xff]
        %v377 = vld [vmem:[#allocation8 + $0x178] sm:$0xff]
        %v378 = vld [vmem:[#allocation8 + $0x180] sm:$0xff]
        %v379 = vld [vmem:[#allocation8 + $0x188] sm:$0xff]
        %v380 = vld [vmem:[#allocation8 + $0x190] sm:$0xff]
        %v381 = vld [vmem:[#allocation8 + $0x198] sm:$0xff]
        %v382 = vld [vmem:[#allocation8 + $0x1a0] sm:$0xf]
        %v383 = vld [vmem:[#allocation8 + $0x1a4] sm:$0xff]
        %v384 = vld [vmem:[#allocation8 + $0x1ac] sm:$0xff]
        %v385 = vld [vmem:[#allocation8 + $0x1b4] sm:$0xff]
        %v386 = vld [vmem:[#allocation8 + $0x1bc] sm:$0xff]
        %v387 = vld [vmem:[#allocation8 + $0x1c4] sm:$0xff]
        %v388 = vld [vmem:[#allocation8 + $0x1cc] sm:$0xff]
        %v389 = vld [vmem:[#allocation8 + $0x1d4] sm:$0xff]
        %v390 = vld [vmem:[#allocation8 + $0x1dc] sm:$0xf]
        %v391 = vld [vmem:[#allocation8 + $0x1e0] sm:$0xff]
        %v392 = vld [vmem:[#allocation8 + $0x1e8] sm:$0xff]
        %v393 = vld [vmem:[#allocation8 + $0x1f0] sm:$0xff]
        %v394 = vld [vmem:[#allocation8 + $0x1f8] sm:$0xff]
        %v395 = vld [vmem:[#allocation8 + $0x200] sm:$0xff]
        %v396 = vld [vmem:[#allocation8 + $0x208] sm:$0xff]
        %v397 = vld [vmem:[#allocation8 + $0x210] sm:$0xff]
        %v398 = vld [vmem:[#allocation8 + $0x218] sm:$0xf]
        %v399 = vld [vmem:[#allocation8 + $0x21c] sm:$0xff]
        %v400 = vld [vmem:[#allocation8 + $0x224] sm:$0xff]
        %v401 = vld [vmem:[#allocation8 + $0x22c] sm:$0xff]
        %v402 = vld [vmem:[#allocation8 + $0x234] sm:$0xff]
        %v403 = vld [vmem:[#allocation8 + $0x23c] sm:$0xff]
        %v404 = vld [vmem:[#allocation8 + $0x244] sm:$0xff]
        %v405 = vld [vmem:[#allocation8 + $0x24c] sm:$0xff]
        %v406 = vld [vmem:[#allocation8 + $0x254] sm:$0xf]
        %v407 = vld [vmem:[#allocation8 + $0x258] sm:$0xff]
        %v408 = vld [vmem:[#allocation8 + $0x260] sm:$0xff]
        %v409 = vld [vmem:[#allocation8 + $0x268] sm:$0xff]
        %v410 = vld [vmem:[#allocation8 + $0x270] sm:$0xff]
        %v411 = vld [vmem:[#allocation8 + $0x278] sm:$0xff]
        %v412 = vld [vmem:[#allocation8 + $0x280] sm:$0xff]
        %v413 = vld [vmem:[#allocation8 + $0x288] sm:$0xff]
        %v414 = vld [vmem:[#allocation8 + $0x290] sm:$0xf]
        %v415 = vld [vmem:[#allocation8 + $0x294] sm:$0xff]
        %v416 = vld [vmem:[#allocation8 + $0x29c] sm:$0xff]
        %v417 = vld [vmem:[#allocation8 + $0x2a4] sm:$0xff]
        %v418 = vld [vmem:[#allocation8 + $0x2ac] sm:$0xff]
        %v419 = vld [vmem:[#allocation8 + $0x2b4] sm:$0xff]
        %v420 = vld [vmem:[#allocation8 + $0x2bc] sm:$0xff]
        %v421 = vld [vmem:[#allocation8 + $0x2c4] sm:$0xff]
        %v422 = vld [vmem:[#allocation8 + $0x2cc] sm:$0xf]
        %v423 = vld [vmem:[#allocation10] ss:$2 sm:$0xff]
        %s424 = scalar_lea.vmem [#allocation10], 16
        %v425 = vld [vmem:[%s424] ss:$2 sm:$0xff]
        %s426 = scalar_lea.vmem [#allocation10], 1
        %v427 = vld [vmem:[%s426] ss:$2 sm:$0xff]
        %v432 = vunpack.c.l.b16 %v323
        %v433 = vunpack.c.l.b16 %v324
        %v434 = vunpack.c.l.b16 %v325
        %v435 = vunpack.c.l.b16 %v326
        %v436 = vpack.c.b16 %v433, %v432
        %v437 = vpack.c.b16 %v435, %v434
        %vm440 = vcmask 261120
        %v442 = vsel %vm440, %v320, 0
        %444 = vmatprep.subr.bf16.mxu0 0
        %445 = vmatpush1.bf16.msra.mxu0 0
        %446 = vmatprep.subr.bf16.mxu0 0
        %447 = vmatpush1.bf16.msra.mxu0 0
        %448 = vmatprep.subr.bf16.mxu0 0
        %449 = vmatpush1.bf16.msra.mxu0 0
        %450 = vmatprep.subr.bf16.mxu0 0
        %451 = vmatpush1.bf16.msra.mxu0 0
        %452 = vmatprep.subr.bf16.mxu0 0
        %453 = vmatpush1.bf16.msra.mxu0 0
        %454 = vmatprep.subr.bf16.mxu0 0
        %455 = vmatpush1.bf16.msra.mxu0 0
        %456 = vmatprep.subr.bf16.mxu0 0
        %457 = vmatpush1.bf16.msra.mxu0 %v437
        %458 = vmatprep.subr.bf16.mxu0 0
        %459 = vmatpush1.bf16.msra.mxu0 %v436
        %460 = vmatprep.subr.bf16.mxu0 0
        %461 = vmatpush2.bf16.msra.mxu0 0
        %462 = vmatprep.subr.bf16.mxu0 0
        %463 = vmatpush2.bf16.msra.mxu0 0
        %464 = vmatprep.subr.bf16.mxu0 0
        %465 = vmatpush2.bf16.msra.mxu0 0
        %466 = vmatprep.subr.bf16.mxu0 0
        %467 = vmatpush2.bf16.msra.mxu0 0
        %468 = vmatprep.subr.bf16.mxu0 0
        %469 = vmatpush2.bf16.msra.mxu0 0
        %470 = vmatprep.subr.bf16.mxu0 0
        %471 = vmatpush2.bf16.msra.mxu0 0
        %472 = vmatprep.subr.bf16.mxu0 0
        %473 = vmatpush2.bf16.msra.mxu0 0
        %474 = vmatprep.subr.bf16.mxu0 0
        %475 = vmatpush2.bf16.msra.mxu0 0
        %476 = vmatprep.mubr.bf16.mxu0 0
        %477 = vmatmul.mubr.bf16.gmra.mxu0 %v442
        %v478 = vpop.f32.mrf.mxu0
        %v479 = vadd.f32 0.0, %v478
        %v480 = vpop.f32.mrf.mxu0
        %v481 = vpop.f32.mrf.mxu0
        %v482 = vpop.f32.mrf.mxu0
        %483 = vdwg.mxu0
        %v484 = vtanh.pop %v479
        %v485 = vpack.c.bf16 %v484, %v484
        %vm486 = vcmask 64512
        %v488 = vsel %vm486, %v322, 0
        %vm490 = vcmask 1043456
        %v492 = vsel %vm490, %v485, 0
        %494 = vmatprep.subr.bf16.mxu0 0
        %495 = vmatpush1.bf16.msra.mxu0 0
        %496 = vmatprep.subr.bf16.mxu0 0
        %497 = vmatpush1.bf16.msra.mxu0 0
        %498 = vmatprep.subr.bf16.mxu0 0
        %499 = vmatpush1.bf16.msra.mxu0 0
        %500 = vmatprep.subr.bf16.mxu0 0
        %501 = vmatpush1.bf16.msra.mxu0 0
        %502 = vmatprep.subr.bf16.mxu0 0
        %503 = vmatpush1.bf16.msra.mxu0 0
        %504 = vmatprep.subr.bf16.mxu0 0
        %505 = vmatpush1.bf16.msra.mxu0 0
        %506 = vmatprep.subr.bf16.mxu0 0
        %507 = vmatpush1.bf16.msra.mxu0 0
        %508 = vmatprep.subr.bf16.mxu0 0
        %509 = vmatpush1.bf16.msra.mxu0 %v492
        %510 = vmatprep.subr.bf16.mxu0 0
        %511 = vmatpush2.bf16.msra.mxu0 0
        %512 = vmatprep.subr.bf16.mxu0 0
        %513 = vmatpush2.bf16.msra.mxu0 0
        %514 = vmatprep.subr.bf16.mxu0 0
        %515 = vmatpush2.bf16.msra.mxu0 0
        %516 = vmatprep.subr.bf16.mxu0 0
        %517 = vmatpush2.bf16.msra.mxu0 0
        %518 = vmatprep.subr.bf16.mxu0 0
        %519 = vmatpush2.bf16.msra.mxu0 0
        %520 = vmatprep.subr.bf16.mxu0 0
        %521 = vmatpush2.bf16.msra.mxu0 0
        %522 = vmatprep.subr.bf16.mxu0 0
        %523 = vmatpush2.bf16.msra.mxu0 0
        %524 = vmatprep.subr.bf16.mxu0 0
        %525 = vmatpush2.bf16.msra.mxu0 0
        %526 = vmatprep.mubr.bf16.mxu0 0
        %527 = vmatmul.mubr.bf16.gmra.mxu0 %v488
        %v528 = vpop.f32.mrf.mxu0
        %v529 = vadd.f32 0.0, %v528
        %v530 = vpop.f32.mrf.mxu0
        %v531 = vpop.f32.mrf.mxu0
        %v532 = vpop.f32.mrf.mxu0
        %533 = vdwg.mxu0
        %v534 = vpack.c.bf16 %v529, %v529
        %v537 = vlaneseq
        %v538 = vshrl.u32 %v537, 7
        %v539 = vsub.s32 0, %v538
        %v540 = vrot.slane %v423, %v539
        %v541 = vlaneseq
        %v542 = vshrl.u32 %v541, 7
        %v543 = vsub.s32 1, %v542
        %v544 = vrot.slane %v423, %v543
        %v545 = vlaneseq
        %v546 = vshrl.u32 %v545, 7
        %v547 = vsub.s32 2, %v546
        %v548 = vrot.slane %v423, %v547
        %v549 = vlaneseq
        %v550 = vshrl.u32 %v549, 7
        %v551 = vsub.s32 3, %v550
        %v552 = vrot.slane %v423, %v551
        %v553 = vlaneseq
        %v554 = vshrl.u32 %v553, 7
        %v555 = vsub.s32 4, %v554
        %v556 = vrot.slane %v423, %v555
        %v557 = vlaneseq
        %v558 = vshrl.u32 %v557, 7
        %v559 = vsub.s32 5, %v558
        %v560 = vrot.slane %v423, %v559
        %v561 = vlaneseq
        %v562 = vshrl.u32 %v561, 7
        %v563 = vsub.s32 6, %v562
        %v564 = vrot.slane %v423, %v563
        %v565 = vlaneseq
        %v566 = vshrl.u32 %v565, 7
        %v567 = vsub.s32 7, %v566
        %v568 = vrot.slane %v423, %v567
        %v569 = vlaneseq
        %v570 = vshrl.u32 %v569, 7
        %v571 = vsub.s32 0, %v570
        %v572 = vrot.slane %v425, %v571
        %v573 = vlaneseq
        %v574 = vshrl.u32 %v573, 7
        %v575 = vsub.s32 1, %v574
        %v576 = vrot.slane %v425, %v575
        %v577 = vlaneseq
        %v578 = vshrl.u32 %v577, 7
        %v579 = vsub.s32 2, %v578
        %v580 = vrot.slane %v425, %v579
        %v581 = vlaneseq
        %v582 = vshrl.u32 %v581, 7
        %v583 = vsub.s32 3, %v582
        %v584 = vrot.slane %v425, %v583
        %v585 = vlaneseq
        %v586 = vshrl.u32 %v585, 7
        %v587 = vsub.s32 4, %v586
        %v588 = vrot.slane %v425, %v587
        %v589 = vlaneseq
        %v590 = vshrl.u32 %v589, 7
        %v591 = vsub.s32 5, %v590
        %v592 = vrot.slane %v425, %v591
        %v593 = vlaneseq
        %v594 = vshrl.u32 %v593, 7
        %v595 = vsub.s32 6, %v594
        %v596 = vrot.slane %v425, %v595
        %v644 = vunpack.c.l.b16 %v327
        %v645 = vunpack.c.h.b16 %v327
        %v646 = vunpack.c.l.b16 %v328
        %v647 = vunpack.c.h.b16 %v328
        %v648 = vunpack.c.l.b16 %v329
        %v649 = vunpack.c.h.b16 %v329
        %v650 = vunpack.c.l.b16 %v330
        %v651 = vunpack.c.h.b16 %v330
        %v652 = vunpack.c.l.b16 %v331
        %v653 = vunpack.c.h.b16 %v331
        %v654 = vunpack.c.l.b16 %v332
        %v655 = vunpack.c.h.b16 %v332
        %v656 = vunpack.c.l.b16 %v333
        %v657 = vunpack.c.h.b16 %v333
        %v658 = vunpack.c.l.b16 %v334
        %v659 = vunpack.c.l.b16 %v335
        %v660 = vunpack.c.h.b16 %v335
        %v661 = vunpack.c.l.b16 %v336
        %v662 = vunpack.c.h.b16 %v336
        %v663 = vunpack.c.l.b16 %v337
        %v664 = vunpack.c.h.b16 %v337
        %v665 = vunpack.c.l.b16 %v338
        %v666 = vunpack.c.h.b16 %v338
        %v667 = vunpack.c.l.b16 %v339
        %v668 = vunpack.c.h.b16 %v339
        %v669 = vunpack.c.l.b16 %v340
        %v670 = vunpack.c.h.b16 %v340
        %v671 = vunpack.c.l.b16 %v341
        %v672 = vunpack.c.h.b16 %v341
        %v673 = vunpack.c.l.b16 %v342
        %v674 = vunpack.c.l.b16 %v343
        %v675 = vunpack.c.h.b16 %v343
        %v676 = vunpack.c.l.b16 %v344
        %v677 = vunpack.c.h.b16 %v344
        %v678 = vunpack.c.l.b16 %v345
        %v679 = vunpack.c.h.b16 %v345
        %v680 = vunpack.c.l.b16 %v346
        %v681 = vunpack.c.h.b16 %v346
        %v682 = vunpack.c.l.b16 %v347
        %v683 = vunpack.c.h.b16 %v347
        %v684 = vunpack.c.l.b16 %v348
        %v685 = vunpack.c.h.b16 %v348
        %v686 = vunpack.c.l.b16 %v349
        %v687 = vunpack.c.h.b16 %v349
        %v688 = vunpack.c.l.b16 %v350
        %v689 = vunpack.c.l.b16 %v351
        %v690 = vunpack.c.h.b16 %v351
        %v691 = vunpack.c.l.b16 %v352
        %v692 = vunpack.c.h.b16 %v352
        %v693 = vunpack.c.l.b16 %v353
        %v694 = vunpack.c.h.b16 %v353
        %v695 = vunpack.c.l.b16 %v354
        %v696 = vunpack.c.h.b16 %v354
        %v697 = vunpack.c.l.b16 %v355
        %v698 = vunpack.c.h.b16 %v355
        %v699 = vunpack.c.l.b16 %v356
        %v700 = vunpack.c.h.b16 %v356
        %v701 = vunpack.c.l.b16 %v357
        %v702 = vunpack.c.h.b16 %v357
        %v703 = vunpack.c.l.b16 %v358
        %v704 = vpack.c.b16 %v659, %v644
        %v705 = vpack.c.b16 %v660, %v645
        %v706 = vpack.c.b16 %v661, %v646
        %v707 = vpack.c.b16 %v662, %v647
        %v708 = vpack.c.b16 %v663, %v648
        %v709 = vpack.c.b16 %v664, %v649
        %v710 = vpack.c.b16 %v665, %v650
        %v711 = vpack.c.b16 %v666, %v651
        %v712 = vpack.c.b16 %v667, %v652
        %v713 = vpack.c.b16 %v668, %v653
        %v714 = vpack.c.b16 %v669, %v654
        %v715 = vpack.c.b16 %v670, %v655
        %v716 = vpack.c.b16 %v671, %v656
        %v717 = vpack.c.b16 %v672, %v657
        %v718 = vpack.c.b16 %v673, %v658
        %v719 = vpack.c.b16 %v689, %v674
        %v720 = vpack.c.b16 %v690, %v675
        %v721 = vpack.c.b16 %v691, %v676
        %v722 = vpack.c.b16 %v692, %v677
        %v723 = vpack.c.b16 %v693, %v678
        %v724 = vpack.c.b16 %v694, %v679
        %v725 = vpack.c.b16 %v695, %v680
        %v726 = vpack.c.b16 %v696, %v681
        %v727 = vpack.c.b16 %v697, %v682
        %v728 = vpack.c.b16 %v698, %v683
        %v729 = vpack.c.b16 %v699, %v684
        %v730 = vpack.c.b16 %v700, %v685
        %v731 = vpack.c.b16 %v701, %v686
        %v732 = vpack.c.b16 %v702, %v687
        %v733 = vpack.c.b16 %v703, %v688
        %v765 = vsel %vm440, %v534, 0
        %767 = vmatprep.subr.bf16.mxu0 0
        %768 = vmatpush1.bf16.msra.mxu0 0
        %769 = vmatprep.subr.bf16.mxu0 0
        %770 = vmatpush1.bf16.msra.mxu0 0
        %771 = vmatprep.subr.bf16.mxu0 0
        %772 = vmatpush1.bf16.msra.mxu0 0
        %773 = vmatprep.subr.bf16.mxu0 0
        %774 = vmatpush1.bf16.msra.mxu0 0
        %775 = vmatprep.subr.bf16.mxu0 0
        %776 = vmatpush1.bf16.msra.mxu0 0
        %777 = vmatprep.subr.bf16.mxu0 0
        %778 = vmatpush1.bf16.msra.mxu0 0
        %779 = vmatprep.subr.bf16.mxu0 %v720
        %780 = vmatpush1.bf16.msra.mxu0 %v719
        %781 = vmatprep.subr.bf16.mxu0 %v705
        %782 = vmatpush1.bf16.msra.mxu0 %v704
        %783 = vmatprep.subr.bf16.mxu0 0
        %784 = vmatpush2.bf16.msra.mxu0 0
        %785 = vmatprep.subr.bf16.mxu0 0
        %786 = vmatpush2.bf16.msra.mxu0 0
        %787 = vmatprep.subr.bf16.mxu0 0
        %788 = vmatpush2.bf16.msra.mxu0 0
        %789 = vmatprep.subr.bf16.mxu0 0
        %790 = vmatpush2.bf16.msra.mxu0 0
        %791 = vmatprep.subr.bf16.mxu0 0
        %792 = vmatpush2.bf16.msra.mxu0 0
        %793 = vmatprep.subr.bf16.mxu0 0
        %794 = vmatpush2.bf16.msra.mxu0 0
        %795 = vmatprep.subr.bf16.mxu0 0
        %796 = vmatpush2.bf16.msra.mxu0 0
        %797 = vmatprep.subr.bf16.mxu0 0
        %798 = vmatpush2.bf16.msra.mxu0 0
        %799 = vmatprep.mubr.bf16.mxu0 0
        %800 = vmatmul.mubr.bf16.gmra.mxu0 %v765
        %v801 = vpop.f32.mrf.mxu0
        %v802 = vadd.f32 %v540, %v801
        %v803 = vpop.f32.mrf.mxu0
        %v804 = vadd.f32 %v544, %v803
        %v805 = vpop.f32.mrf.mxu0
        %v806 = vpop.f32.mrf.mxu0
        %807 = vdwg.mxu0
        %808 = vmatprep.subr.bf16.mxu0 0
        %809 = vmatpush1.bf16.msra.mxu0 0
        %810 = vmatprep.subr.bf16.mxu0 0
        %811 = vmatpush1.bf16.msra.mxu0 0
        %812 = vmatprep.subr.bf16.mxu0 0
        %813 = vmatpush1.bf16.msra.mxu0 0
        %814 = vmatprep.subr.bf16.mxu0 0
        %815 = vmatpush1.bf16.msra.mxu0 0
        %816 = vmatprep.subr.bf16.mxu0 0
        %817 = vmatpush1.bf16.msra.mxu0 0
        %818 = vmatprep.subr.bf16.mxu0 0
        %819 = vmatpush1.bf16.msra.mxu0 0
        %820 = vmatprep.subr.bf16.mxu0 %v722
        %821 = vmatpush1.bf16.msra.mxu0 %v721
        %822 = vmatprep.subr.bf16.mxu0 %v707
        %823 = vmatpush1.bf16.msra.mxu0 %v706
        %824 = vmatprep.subr.bf16.mxu0 0
        %825 = vmatpush2.bf16.msra.mxu0 0
        %826 = vmatprep.subr.bf16.mxu0 0
        %827 = vmatpush2.bf16.msra.mxu0 0
        %828 = vmatprep.subr.bf16.mxu0 0
        %829 = vmatpush2.bf16.msra.mxu0 0
        %830 = vmatprep.subr.bf16.mxu0 0
        %831 = vmatpush2.bf16.msra.mxu0 0
        %832 = vmatprep.subr.bf16.mxu0 0
        %833 = vmatpush2.bf16.msra.mxu0 0
        %834 = vmatprep.subr.bf16.mxu0 0
        %835 = vmatpush2.bf16.msra.mxu0 0
        %836 = vmatprep.subr.bf16.mxu0 0
        %837 = vmatpush2.bf16.msra.mxu0 0
        %838 = vmatprep.subr.bf16.mxu0 0
        %839 = vmatpush2.bf16.msra.mxu0 0
        %840 = vmatprep.mubr.bf16.mxu0 0
        %841 = vmatmul.mubr.bf16.gmra.mxu0 %v765
        %v842 = vpop.f32.mrf.mxu0
        %v843 = vadd.f32 %v548, %v842
        %v844 = vpop.f32.mrf.mxu0
        %v845 = vadd.f32 %v552, %v844
        %v846 = vpop.f32.mrf.mxu0
        %v847 = vpop.f32.mrf.mxu0
        %848 = vdwg.mxu0
        %849 = vmatprep.subr.bf16.mxu0 0
        %850 = vmatpush1.bf16.msra.mxu0 0
        %851 = vmatprep.subr.bf16.mxu0 0
        %852 = vmatpush1.bf16.msra.mxu0 0
        %853 = vmatprep.subr.bf16.mxu0 0
        %854 = vmatpush1.bf16.msra.mxu0 0
        %855 = vmatprep.subr.bf16.mxu0 0
        %856 = vmatpush1.bf16.msra.mxu0 0
        %857 = vmatprep.subr.bf16.mxu0 0
        %858 = vmatpush1.bf16.msra.mxu0 0
        %859 = vmatprep.subr.bf16.mxu0 0
        %860 = vmatpush1.bf16.msra.mxu0 0
        %861 = vmatprep.subr.bf16.mxu0 %v724
        %862 = vmatpush1.bf16.msra.mxu0 %v723
        %863 = vmatprep.subr.bf16.mxu0 %v709
        %864 = vmatpush1.bf16.msra.mxu0 %v708
        %865 = vmatprep.subr.bf16.mxu0 0
        %866 = vmatpush2.bf16.msra.mxu0 0
        %867 = vmatprep.subr.bf16.mxu0 0
        %868 = vmatpush2.bf16.msra.mxu0 0
        %869 = vmatprep.subr.bf16.mxu0 0
        %870 = vmatpush2.bf16.msra.mxu0 0
        %871 = vmatprep.subr.bf16.mxu0 0
        %872 = vmatpush2.bf16.msra.mxu0 0
        %873 = vmatprep.subr.bf16.mxu0 0
        %874 = vmatpush2.bf16.msra.mxu0 0
        %875 = vmatprep.subr.bf16.mxu0 0
        %876 = vmatpush2.bf16.msra.mxu0 0
        %877 = vmatprep.subr.bf16.mxu0 0
        %878 = vmatpush2.bf16.msra.mxu0 0
        %879 = vmatprep.subr.bf16.mxu0 0
        %880 = vmatpush2.bf16.msra.mxu0 0
        %881 = vmatprep.mubr.bf16.mxu0 0
        %882 = vmatmul.mubr.bf16.gmra.mxu0 %v765
        %v883 = vpop.f32.mrf.mxu0
        %v884 = vadd.f32 %v556, %v883
        %v885 = vpop.f32.mrf.mxu0
        %v886 = vadd.f32 %v560, %v885
        %v887 = vpop.f32.mrf.mxu0
        %v888 = vpop.f32.mrf.mxu0
        %889 = vdwg.mxu0
        %890 = vmatprep.subr.bf16.mxu0 0
        %891 = vmatpush1.bf16.msra.mxu0 0
        %892 = vmatprep.subr.bf16.mxu0 0
        %893 = vmatpush1.bf16.msra.mxu0 0
        %894 = vmatprep.subr.bf16.mxu0 0
        %895 = vmatpush1.bf16.msra.mxu0 0
        %896 = vmatprep.subr.bf16.mxu0 0
        %897 = vmatpush1.bf16.msra.mxu0 0
        %898 = vmatprep.subr.bf16.mxu0 0
        %899 = vmatpush1.bf16.msra.mxu0 0
        %900 = vmatprep.subr.bf16.mxu0 0
        %901 = vmatpush1.bf16.msra.mxu0 0
        %902 = vmatprep.subr.bf16.mxu0 %v726
        %903 = vmatpush1.bf16.msra.mxu0 %v725
        %904 = vmatprep.subr.bf16.mxu0 %v711
        %905 = vmatpush1.bf16.msra.mxu0 %v710
        %906 = vmatprep.subr.bf16.mxu0 0
        %907 = vmatpush2.bf16.msra.mxu0 0
        %908 = vmatprep.subr.bf16.mxu0 0
        %909 = vmatpush2.bf16.msra.mxu0 0
        %910 = vmatprep.subr.bf16.mxu0 0
        %911 = vmatpush2.bf16.msra.mxu0 0
        %912 = vmatprep.subr.bf16.mxu0 0
        %913 = vmatpush2.bf16.msra.mxu0 0
        %914 = vmatprep.subr.bf16.mxu0 0
        %915 = vmatpush2.bf16.msra.mxu0 0
        %916 = vmatprep.subr.bf16.mxu0 0
        %917 = vmatpush2.bf16.msra.mxu0 0
        %918 = vmatprep.subr.bf16.mxu0 0
        %919 = vmatpush2.bf16.msra.mxu0 0
        %920 = vmatprep.subr.bf16.mxu0 0
        %921 = vmatpush2.bf16.msra.mxu0 0
        %922 = vmatprep.mubr.bf16.mxu0 0
        %923 = vmatmul.mubr.bf16.gmra.mxu0 %v765
        %v924 = vpop.f32.mrf.mxu0
        %v925 = vadd.f32 %v564, %v924
        %v926 = vpop.f32.mrf.mxu0
        %v927 = vadd.f32 %v568, %v926
        %v928 = vpop.f32.mrf.mxu0
        %v929 = vpop.f32.mrf.mxu0
        %930 = vdwg.mxu0
        %931 = vmatprep.subr.bf16.mxu0 0
        %932 = vmatpush1.bf16.msra.mxu0 0
        %933 = vmatprep.subr.bf16.mxu0 0
        %934 = vmatpush1.bf16.msra.mxu0 0
        %935 = vmatprep.subr.bf16.mxu0 0
        %936 = vmatpush1.bf16.msra.mxu0 0
        %937 = vmatprep.subr.bf16.mxu0 0
        %938 = vmatpush1.bf16.msra.mxu0 0
        %939 = vmatprep.subr.bf16.mxu0 0
        %940 = vmatpush1.bf16.msra.mxu0 0
        %941 = vmatprep.subr.bf16.mxu0 0
        %942 = vmatpush1.bf16.msra.mxu0 0
        %943 = vmatprep.subr.bf16.mxu0 %v728
        %944 = vmatpush1.bf16.msra.mxu0 %v727
        %945 = vmatprep.subr.bf16.mxu0 %v713
        %946 = vmatpush1.bf16.msra.mxu0 %v712
        %947 = vmatprep.subr.bf16.mxu0 0
        %948 = vmatpush2.bf16.msra.mxu0 0
        %949 = vmatprep.subr.bf16.mxu0 0
        %950 = vmatpush2.bf16.msra.mxu0 0
        %951 = vmatprep.subr.bf16.mxu0 0
        %952 = vmatpush2.bf16.msra.mxu0 0
        %953 = vmatprep.subr.bf16.mxu0 0
        %954 = vmatpush2.bf16.msra.mxu0 0
        %955 = vmatprep.subr.bf16.mxu0 0
        %956 = vmatpush2.bf16.msra.mxu0 0
        %957 = vmatprep.subr.bf16.mxu0 0
        %958 = vmatpush2.bf16.msra.mxu0 0
        %959 = vmatprep.subr.bf16.mxu0 0
        %960 = vmatpush2.bf16.msra.mxu0 0
        %961 = vmatprep.subr.bf16.mxu0 0
        %962 = vmatpush2.bf16.msra.mxu0 0
        %963 = vmatprep.mubr.bf16.mxu0 0
        %964 = vmatmul.mubr.bf16.gmra.mxu0 %v765
        %v965 = vpop.f32.mrf.mxu0
        %v966 = vadd.f32 %v572, %v965
        %v967 = vpop.f32.mrf.mxu0
        %v968 = vadd.f32 %v576, %v967
        %v969 = vpop.f32.mrf.mxu0
        %v970 = vpop.f32.mrf.mxu0
        %971 = vdwg.mxu0
        %972 = vmatprep.subr.bf16.mxu0 0
        %973 = vmatpush1.bf16.msra.mxu0 0
        %974 = vmatprep.subr.bf16.mxu0 0
        %975 = vmatpush1.bf16.msra.mxu0 0
        %976 = vmatprep.subr.bf16.mxu0 0
        %977 = vmatpush1.bf16.msra.mxu0 0
        %978 = vmatprep.subr.bf16.mxu0 0
        %979 = vmatpush1.bf16.msra.mxu0 0
        %980 = vmatprep.subr.bf16.mxu0 0
        %981 = vmatpush1.bf16.msra.mxu0 0
        %982 = vmatprep.subr.bf16.mxu0 0
        %983 = vmatpush1.bf16.msra.mxu0 0
        %984 = vmatprep.subr.bf16.mxu0 %v730
        %985 = vmatpush1.bf16.msra.mxu0 %v729
        %986 = vmatprep.subr.bf16.mxu0 %v715
        %987 = vmatpush1.bf16.msra.mxu0 %v714
        %988 = vmatprep.subr.bf16.mxu0 0
        %989 = vmatpush2.bf16.msra.mxu0 0
        %990 = vmatprep.subr.bf16.mxu0 0
        %991 = vmatpush2.bf16.msra.mxu0 0
        %992 = vmatprep.subr.bf16.mxu0 0
        %993 = vmatpush2.bf16.msra.mxu0 0
        %994 = vmatprep.subr.bf16.mxu0 0
        %995 = vmatpush2.bf16.msra.mxu0 0
        %996 = vmatprep.subr.bf16.mxu0 0
        %997 = vmatpush2.bf16.msra.mxu0 0
        %998 = vmatprep.subr.bf16.mxu0 0
        %999 = vmatpush2.bf16.msra.mxu0 0
        %1000 = vmatprep.subr.bf16.mxu0 0
        %1001 = vmatpush2.bf16.msra.mxu0 0
        %1002 = vmatprep.subr.bf16.mxu0 0
        %1003 = vmatpush2.bf16.msra.mxu0 0
        %1004 = vmatprep.mubr.bf16.mxu0 0
        %1005 = vmatmul.mubr.bf16.gmra.mxu0 %v765
        %v1006 = vpop.f32.mrf.mxu0
        %v1007 = vadd.f32 %v580, %v1006
        %v1008 = vpop.f32.mrf.mxu0
        %v1009 = vadd.f32 %v584, %v1008
        %v1010 = vpop.f32.mrf.mxu0
        %v1011 = vpop.f32.mrf.mxu0
        %1012 = vdwg.mxu0
        %1013 = vmatprep.subr.bf16.mxu0 0
        %1014 = vmatpush1.bf16.msra.mxu0 0
        %1015 = vmatprep.subr.bf16.mxu0 0
        %1016 = vmatpush1.bf16.msra.mxu0 0
        %1017 = vmatprep.subr.bf16.mxu0 0
        %1018 = vmatpush1.bf16.msra.mxu0 0
        %1019 = vmatprep.subr.bf16.mxu0 0
        %1020 = vmatpush1.bf16.msra.mxu0 0
        %1021 = vmatprep.subr.bf16.mxu0 0
        %1022 = vmatpush1.bf16.msra.mxu0 0
        %1023 = vmatprep.subr.bf16.mxu0 0
        %1024 = vmatpush1.bf16.msra.mxu0 0
        %1025 = vmatprep.subr.bf16.mxu0 %v732
        %1026 = vmatpush1.bf16.msra.mxu0 %v731
        %1027 = vmatprep.subr.bf16.mxu0 %v717
        %1028 = vmatpush1.bf16.msra.mxu0 %v716
        %1029 = vmatprep.subr.bf16.mxu0 0
        %1030 = vmatpush2.bf16.msra.mxu0 0
        %1031 = vmatprep.subr.bf16.mxu0 0
        %1032 = vmatpush2.bf16.msra.mxu0 0
        %1033 = vmatprep.subr.bf16.mxu0 0
        %1034 = vmatpush2.bf16.msra.mxu0 0
        %1035 = vmatprep.subr.bf16.mxu0 0
        %1036 = vmatpush2.bf16.msra.mxu0 0
        %1037 = vmatprep.subr.bf16.mxu0 0
        %1038 = vmatpush2.bf16.msra.mxu0 0
        %1039 = vmatprep.subr.bf16.mxu0 0
        %1040 = vmatpush2.bf16.msra.mxu0 0
        %1041 = vmatprep.subr.bf16.mxu0 0
        %1042 = vmatpush2.bf16.msra.mxu0 0
        %1043 = vmatprep.subr.bf16.mxu0 0
        %1044 = vmatpush2.bf16.msra.mxu0 0
        %1045 = vmatprep.mubr.bf16.mxu0 0
        %1046 = vmatmul.mubr.bf16.gmra.mxu0 %v765
        %v1047 = vpop.f32.mrf.mxu0
        %v1048 = vadd.f32 %v588, %v1047
        %v1049 = vpop.f32.mrf.mxu0
        %v1050 = vadd.f32 %v592, %v1049
        %v1051 = vpop.f32.mrf.mxu0
        %v1052 = vpop.f32.mrf.mxu0
        %1053 = vdwg.mxu0
        %1054 = vmatprep.subr.bf16.mxu0 0
        %1055 = vmatpush1.bf16.msra.mxu0 0
        %1056 = vmatprep.subr.bf16.mxu0 0
        %1057 = vmatpush1.bf16.msra.mxu0 0
        %1058 = vmatprep.subr.bf16.mxu0 0
        %1059 = vmatpush1.bf16.msra.mxu0 0
        %1060 = vmatprep.subr.bf16.mxu0 0
        %1061 = vmatpush1.bf16.msra.mxu0 0
        %1062 = vmatprep.subr.bf16.mxu0 0
        %1063 = vmatpush1.bf16.msra.mxu0 0
        %1064 = vmatprep.subr.bf16.mxu0 0
        %1065 = vmatpush1.bf16.msra.mxu0 0
        %1066 = vmatprep.subr.bf16.mxu0 0
        %1067 = vmatpush1.bf16.msra.mxu0 %v733
        %1068 = vmatprep.subr.bf16.mxu0 0
        %1069 = vmatpush1.bf16.msra.mxu0 %v718
        %1070 = vmatprep.subr.bf16.mxu0 0
        %1071 = vmatpush2.bf16.msra.mxu0 0
        %1072 = vmatprep.subr.bf16.mxu0 0
        %1073 = vmatpush2.bf16.msra.mxu0 0
        %1074 = vmatprep.subr.bf16.mxu0 0
        %1075 = vmatpush2.bf16.msra.mxu0 0
        %1076 = vmatprep.subr.bf16.mxu0 0
        %1077 = vmatpush2.bf16.msra.mxu0 0
        %1078 = vmatprep.subr.bf16.mxu0 0
        %1079 = vmatpush2.bf16.msra.mxu0 0
        %1080 = vmatprep.subr.bf16.mxu0 0
        %1081 = vmatpush2.bf16.msra.mxu0 0
        %1082 = vmatprep.subr.bf16.mxu0 0
        %1083 = vmatpush2.bf16.msra.mxu0 0
        %1084 = vmatprep.subr.bf16.mxu0 0
        %1085 = vmatpush2.bf16.msra.mxu0 0
        %1086 = vmatprep.mubr.bf16.mxu0 0
        %1087 = vmatmul.mubr.bf16.gmra.mxu0 %v765
        %v1088 = vpop.f32.mrf.mxu0
        %v1089 = vadd.f32 %v596, %v1088
        %v1090 = vpop.f32.mrf.mxu0
        %v1091 = vpop.f32.mrf.mxu0
        %v1092 = vpop.f32.mrf.mxu0
        %1093 = vdwg.mxu0
        %v1094 = vtanh.pop %v802
        %v1095 = vtanh.pop %v804
        %v1096 = vtanh.pop %v843
        %v1097 = vtanh.pop %v845
        %v1098 = vtanh.pop %v884
        %v1099 = vtanh.pop %v886
        %v1100 = vtanh.pop %v925
        %v1101 = vtanh.pop %v927
        %v1102 = vtanh.pop %v966
        %v1103 = vtanh.pop %v968
        %v1104 = vtanh.pop %v1007
        %v1105 = vtanh.pop %v1009
        %v1106 = vtanh.pop %v1048
        %v1107 = vtanh.pop %v1050
        %v1108 = vtanh.pop %v1089
        %v1109 = vpack.c.bf16 %v1094, %v1094
        %v1110 = vpack.c.bf16 %v1095, %v1095
        %v1111 = vpack.c.bf16 %v1096, %v1096
        %v1112 = vpack.c.bf16 %v1097, %v1097
        %v1113 = vpack.c.bf16 %v1098, %v1098
        %v1114 = vpack.c.bf16 %v1099, %v1099
        %v1115 = vpack.c.bf16 %v1100, %v1100
        %v1116 = vpack.c.bf16 %v1101, %v1101
        %v1117 = vpack.c.bf16 %v1102, %v1102
        %v1118 = vpack.c.bf16 %v1103, %v1103
        %v1119 = vpack.c.bf16 %v1104, %v1104
        %v1120 = vpack.c.bf16 %v1105, %v1105
        %v1121 = vpack.c.bf16 %v1106, %v1106
        %v1122 = vpack.c.bf16 %v1107, %v1107
        %v1123 = vpack.c.bf16 %v1108, %v1108
        %v1188 = vunpack.c.l.b16 %v359
        %v1189 = vunpack.c.h.b16 %v359
        %v1190 = vunpack.c.l.b16 %v360
        %v1191 = vunpack.c.h.b16 %v360
        %v1192 = vunpack.c.l.b16 %v361
        %v1193 = vunpack.c.h.b16 %v361
        %v1194 = vunpack.c.l.b16 %v362
        %v1195 = vunpack.c.h.b16 %v362
        %v1196 = vunpack.c.l.b16 %v363
        %v1197 = vunpack.c.h.b16 %v363
        %v1198 = vunpack.c.l.b16 %v364
        %v1199 = vunpack.c.h.b16 %v364
        %v1200 = vunpack.c.l.b16 %v365
        %v1201 = vunpack.c.h.b16 %v365
        %v1202 = vunpack.c.l.b16 %v366
        %v1203 = vunpack.c.l.b16 %v367
        %v1204 = vunpack.c.h.b16 %v367
        %v1205 = vunpack.c.l.b16 %v368
        %v1206 = vunpack.c.h.b16 %v368
        %v1207 = vunpack.c.l.b16 %v369
        %v1208 = vunpack.c.h.b16 %v369
        %v1209 = vunpack.c.l.b16 %v370
        %v1210 = vunpack.c.h.b16 %v370
        %v1211 = vunpack.c.l.b16 %v371
        %v1212 = vunpack.c.h.b16 %v371
        %v1213 = vunpack.c.l.b16 %v372
        %v1214 = vunpack.c.h.b16 %v372
        %v1215 = vunpack.c.l.b16 %v373
        %v1216 = vunpack.c.h.b16 %v373
        %v1217 = vunpack.c.l.b16 %v374
        %v1218 = vunpack.c.l.b16 %v375
        %v1219 = vunpack.c.h.b16 %v375
        %v1220 = vunpack.c.l.b16 %v376
        %v1221 = vunpack.c.h.b16 %v376
        %v1222 = vunpack.c.l.b16 %v377
        %v1223 = vunpack.c.h.b16 %v377
        %v1224 = vunpack.c.l.b16 %v378
        %v1225 = vunpack.c.h.b16 %v378
        %v1226 = vunpack.c.l.b16 %v379
        %v1227 = vunpack.c.h.b16 %v379
        %v1228 = vunpack.c.l.b16 %v380
        %v1229 = vunpack.c.h.b16 %v380
        %v1230 = vunpack.c.l.b16 %v381
        %v1231 = vunpack.c.h.b16 %v381
        %v1232 = vunpack.c.l.b16 %v382
        %v1233 = vunpack.c.l.b16 %v383
        %v1234 = vunpack.c.h.b16 %v383
        %v1235 = vunpack.c.l.b16 %v384
        %v1236 = vunpack.c.h.b16 %v384
        %v1237 = vunpack.c.l.b16 %v385
        %v1238 = vunpack.c.h.b16 %v385
        %v1239 = vunpack.c.l.b16 %v386
        %v1240 = vunpack.c.h.b16 %v386
        %v1241 = vunpack.c.l.b16 %v387
        %v1242 = vunpack.c.h.b16 %v387
        %v1243 = vunpack.c.l.b16 %v388
        %v1244 = vunpack.c.h.b16 %v388
        %v1245 = vunpack.c.l.b16 %v389
        %v1246 = vunpack.c.h.b16 %v389
        %v1247 = vunpack.c.l.b16 %v390
        %v1248 = vunpack.c.l.b16 %v391
        %v1249 = vunpack.c.h.b16 %v391
        %v1250 = vunpack.c.l.b16 %v392
        %v1251 = vunpack.c.h.b16 %v392
        %v1252 = vunpack.c.l.b16 %v393
        %v1253 = vunpack.c.h.b16 %v393
        %v1254 = vunpack.c.l.b16 %v394
        %v1255 = vunpack.c.h.b16 %v394
        %v1256 = vunpack.c.l.b16 %v395
        %v1257 = vunpack.c.h.b16 %v395
        %v1258 = vunpack.c.l.b16 %v396
        %v1259 = vunpack.c.h.b16 %v396
        %v1260 = vunpack.c.l.b16 %v397
        %v1261 = vunpack.c.h.b16 %v397
        %v1262 = vunpack.c.l.b16 %v398
        %v1263 = vunpack.c.l.b16 %v399
        %v1264 = vunpack.c.h.b16 %v399
        %v1265 = vunpack.c.l.b16 %v400
        %v1266 = vunpack.c.h.b16 %v400
        %v1267 = vunpack.c.l.b16 %v401
        %v1268 = vunpack.c.h.b16 %v401
        %v1269 = vunpack.c.l.b16 %v402
        %v1270 = vunpack.c.h.b16 %v402
        %v1271 = vunpack.c.l.b16 %v403
        %v1272 = vunpack.c.h.b16 %v403
        %v1273 = vunpack.c.l.b16 %v404
        %v1274 = vunpack.c.h.b16 %v404
        %v1275 = vunpack.c.l.b16 %v405
        %v1276 = vunpack.c.h.b16 %v405
        %v1277 = vunpack.c.l.b16 %v406
        %v1278 = vunpack.c.l.b16 %v407
        %v1279 = vunpack.c.h.b16 %v407
        %v1280 = vunpack.c.l.b16 %v408
        %v1281 = vunpack.c.h.b16 %v408
        %v1282 = vunpack.c.l.b16 %v409
        %v1283 = vunpack.c.h.b16 %v409
        %v1284 = vunpack.c.l.b16 %v410
        %v1285 = vunpack.c.h.b16 %v410
        %v1286 = vunpack.c.l.b16 %v411
        %v1287 = vunpack.c.h.b16 %v411
        %v1288 = vunpack.c.l.b16 %v412
        %v1289 = vunpack.c.h.b16 %v412
        %v1290 = vunpack.c.l.b16 %v413
        %v1291 = vunpack.c.h.b16 %v413
        %v1292 = vunpack.c.l.b16 %v414
        %v1293 = vunpack.c.l.b16 %v415
        %v1294 = vunpack.c.h.b16 %v415
        %v1295 = vunpack.c.l.b16 %v416
        %v1296 = vunpack.c.h.b16 %v416
        %v1297 = vunpack.c.l.b16 %v417
        %v1298 = vunpack.c.h.b16 %v417
        %v1299 = vunpack.c.l.b16 %v418
        %v1300 = vunpack.c.h.b16 %v418
        %v1301 = vunpack.c.l.b16 %v419
        %v1302 = vunpack.c.h.b16 %v419
        %v1303 = vunpack.c.l.b16 %v420
        %v1304 = vunpack.c.h.b16 %v420
        %v1305 = vunpack.c.l.b16 %v421
        %v1306 = vunpack.c.h.b16 %v421
        %v1307 = vunpack.c.l.b16 %v422
        %v1308 = vpack.c.b16 %v1203, %v1188
        %v1309 = vpack.c.b16 %v1204, %v1189
        %v1310 = vpack.c.b16 %v1205, %v1190
        %v1311 = vpack.c.b16 %v1206, %v1191
        %v1312 = vpack.c.b16 %v1207, %v1192
        %v1313 = vpack.c.b16 %v1208, %v1193
        %v1314 = vpack.c.b16 %v1209, %v1194
        %v1315 = vpack.c.b16 %v1210, %v1195
        %v1316 = vpack.c.b16 %v1211, %v1196
        %v1317 = vpack.c.b16 %v1212, %v1197
        %v1318 = vpack.c.b16 %v1213, %v1198
        %v1319 = vpack.c.b16 %v1214, %v1199
        %v1320 = vpack.c.b16 %v1215, %v1200
        %v1321 = vpack.c.b16 %v1216, %v1201
        %v1322 = vpack.c.b16 %v1217, %v1202
        %v1323 = vpack.c.b16 %v1233, %v1218
        %v1324 = vpack.c.b16 %v1234, %v1219
        %v1325 = vpack.c.b16 %v1235, %v1220
        %v1326 = vpack.c.b16 %v1236, %v1221
        %v1327 = vpack.c.b16 %v1237, %v1222
        %v1328 = vpack.c.b16 %v1238, %v1223
        %v1329 = vpack.c.b16 %v1239, %v1224
        %v1330 = vpack.c.b16 %v1240, %v1225
        %v1331 = vpack.c.b16 %v1241, %v1226
        %v1332 = vpack.c.b16 %v1242, %v1227
        %v1333 = vpack.c.b16 %v1243, %v1228
        %v1334 = vpack.c.b16 %v1244, %v1229
        %v1335 = vpack.c.b16 %v1245, %v1230
        %v1336 = vpack.c.b16 %v1246, %v1231
        %v1337 = vpack.c.b16 %v1247, %v1232
        %v1338 = vpack.c.b16 %v1263, %v1248
        %v1339 = vpack.c.b16 %v1264, %v1249
        %v1340 = vpack.c.b16 %v1265, %v1250
        %v1341 = vpack.c.b16 %v1266, %v1251
        %v1342 = vpack.c.b16 %v1267, %v1252
        %v1343 = vpack.c.b16 %v1268, %v1253
        %v1344 = vpack.c.b16 %v1269, %v1254
        %v1345 = vpack.c.b16 %v1270, %v1255
        %v1346 = vpack.c.b16 %v1271, %v1256
        %v1347 = vpack.c.b16 %v1272, %v1257
        %v1348 = vpack.c.b16 %v1273, %v1258
        %v1349 = vpack.c.b16 %v1274, %v1259
        %v1350 = vpack.c.b16 %v1275, %v1260
        %v1351 = vpack.c.b16 %v1276, %v1261
        %v1352 = vpack.c.b16 %v1277, %v1262
        %v1353 = vpack.c.b16 %v1293, %v1278
        %v1354 = vpack.c.b16 %v1294, %v1279
        %v1355 = vpack.c.b16 %v1295, %v1280
        %v1356 = vpack.c.b16 %v1296, %v1281
        %v1357 = vpack.c.b16 %v1297, %v1282
        %v1358 = vpack.c.b16 %v1298, %v1283
        %v1359 = vpack.c.b16 %v1299, %v1284
        %v1360 = vpack.c.b16 %v1300, %v1285
        %v1361 = vpack.c.b16 %v1301, %v1286
        %v1362 = vpack.c.b16 %v1302, %v1287
        %v1363 = vpack.c.b16 %v1303, %v1288
        %v1364 = vpack.c.b16 %v1304, %v1289
        %v1365 = vpack.c.b16 %v1305, %v1290
        %v1366 = vpack.c.b16 %v1306, %v1291
        %v1367 = vpack.c.b16 %v1307, %v1292
        %1428 = vmatprep.subr.bf16.mxu0 0
        %1429 = vmatpush1.bf16.xpose.msra.mxu0 0
        %1430 = vmatprep.subr.bf16.mxu0 0
        %1431 = vmatpush1.bf16.xpose.msra.mxu0 0
        %1432 = vmatprep.subr.bf16.mxu0 0
        %1433 = vmatpush1.bf16.xpose.msra.mxu0 0
        %1434 = vmatprep.subr.bf16.mxu0 0
        %1435 = vmatpush1.bf16.xpose.msra.mxu0 0
        %1436 = vmatprep.subr.bf16.mxu0 %v1354
        %1437 = vmatpush1.bf16.xpose.msra.mxu0 %v1353
        %1438 = vmatprep.subr.bf16.mxu0 %v1339
        %1439 = vmatpush1.bf16.xpose.msra.mxu0 %v1338
        %1440 = vmatprep.subr.bf16.mxu0 %v1324
        %1441 = vmatpush1.bf16.xpose.msra.mxu0 %v1323
        %1442 = vmatprep.subr.bf16.mxu0 %v1309
        %1443 = vmatpush1.bf16.xpose.msra.mxu0 %v1308
        %1444 = vmatprep.subr.bf16.mxu0 0
        %1445 = vmatpush2.bf16.xpose.msra.mxu0 0
        %1446 = vmatprep.subr.bf16.mxu0 0
        %1447 = vmatpush2.bf16.xpose.msra.mxu0 0
        %1448 = vmatprep.subr.bf16.mxu0 0
        %1449 = vmatpush2.bf16.xpose.msra.mxu0 0
        %1450 = vmatprep.subr.bf16.mxu0 0
        %1451 = vmatpush2.bf16.xpose.msra.mxu0 0
        %1452 = vmatprep.subr.bf16.mxu0 0
        %1453 = vmatpush2.bf16.xpose.msra.mxu0 0
        %1454 = vmatprep.subr.bf16.mxu0 0
        %1455 = vmatpush2.bf16.xpose.msra.mxu0 0
        %1456 = vmatprep.subr.bf16.mxu0 0
        %1457 = vmatpush2.bf16.xpose.msra.mxu0 0
        %1458 = vmatprep.subr.bf16.mxu0 0
        %1459 = vmatpush2.bf16.xpose.msra.mxu0 0
        %1460 = vmatprep.mubr.bf16.mxu0 %v1110
        %1461 = vmatmul.mubr.bf16.gmra.mxu0 %v1109
        %v1462 = vpop.f32.mrf.mxu0
        %v1463 = vadd.f32 0.0, %v1462
        %v1464 = vpop.f32.mrf.mxu0
        %v1465 = vpop.f32.mrf.mxu0
        %v1466 = vpop.f32.mrf.mxu0
        %1467 = vdwg.mxu0
        %1468 = vmatprep.subr.bf16.mxu0 0
        %1469 = vmatpush1.bf16.xpose.msra.mxu0 0
        %1470 = vmatprep.subr.bf16.mxu0 0
        %1471 = vmatpush1.bf16.xpose.msra.mxu0 0
        %1472 = vmatprep.subr.bf16.mxu0 0
        %1473 = vmatpush1.bf16.xpose.msra.mxu0 0
        %1474 = vmatprep.subr.bf16.mxu0 0
        %1475 = vmatpush1.bf16.xpose.msra.mxu0 0
        %1476 = vmatprep.subr.bf16.mxu0 %v1356
        %1477 = vmatpush1.bf16.xpose.msra.mxu0 %v1355
        %1478 = vmatprep.subr.bf16.mxu0 %v1341
        %1479 = vmatpush1.bf16.xpose.msra.mxu0 %v1340
        %1480 = vmatprep.subr.bf16.mxu0 %v1326
        %1481 = vmatpush1.bf16.xpose.msra.mxu0 %v1325
        %1482 = vmatprep.subr.bf16.mxu0 %v1311
        %1483 = vmatpush1.bf16.xpose.msra.mxu0 %v1310
        %1484 = vmatprep.subr.bf16.mxu0 0
        %1485 = vmatpush2.bf16.xpose.msra.mxu0 0
        %1486 = vmatprep.subr.bf16.mxu0 0
        %1487 = vmatpush2.bf16.xpose.msra.mxu0 0
        %1488 = vmatprep.subr.bf16.mxu0 0
        %1489 = vmatpush2.bf16.xpose.msra.mxu0 0
        %1490 = vmatprep.subr.bf16.mxu0 0
        %1491 = vmatpush2.bf16.xpose.msra.mxu0 0
        %1492 = vmatprep.subr.bf16.mxu0 0
        %1493 = vmatpush2.bf16.xpose.msra.mxu0 0
        %1494 = vmatprep.subr.bf16.mxu0 0
        %1495 = vmatpush2.bf16.xpose.msra.mxu0 0
        %1496 = vmatprep.subr.bf16.mxu0 0
        %1497 = vmatpush2.bf16.xpose.msra.mxu0 0
        %1498 = vmatprep.subr.bf16.mxu0 0
        %1499 = vmatpush2.bf16.xpose.msra.mxu0 0
        %1500 = vmatprep.mubr.bf16.mxu0 %v1112
        %1501 = vmatmul.mubr.bf16.gmra.mxu0 %v1111
        %v1502 = vpop.f32.mrf.mxu0
        %v1503 = vadd.f32 %v1463, %v1502
        %v1504 = vpop.f32.mrf.mxu0
        %v1505 = vpop.f32.mrf.mxu0
        %v1506 = vpop.f32.mrf.mxu0
        %1507 = vdwg.mxu0
        %1508 = vmatprep.subr.bf16.mxu0 0
        %1509 = vmatpush1.bf16.xpose.msra.mxu0 0
        %1510 = vmatprep.subr.bf16.mxu0 0
        %1511 = vmatpush1.bf16.xpose.msra.mxu0 0
        %1512 = vmatprep.subr.bf16.mxu0 0
        %1513 = vmatpush1.bf16.xpose.msra.mxu0 0
        %1514 = vmatprep.subr.bf16.mxu0 0
        %1515 = vmatpush1.bf16.xpose.msra.mxu0 0
        %1516 = vmatprep.subr.bf16.mxu0 %v1358
        %1517 = vmatpush1.bf16.xpose.msra.mxu0 %v1357
        %1518 = vmatprep.subr.bf16.mxu0 %v1343
        %1519 = vmatpush1.bf16.xpose.msra.mxu0 %v1342
        %1520 = vmatprep.subr.bf16.mxu0 %v1328
        %1521 = vmatpush1.bf16.xpose.msra.mxu0 %v1327
        %1522 = vmatprep.subr.bf16.mxu0 %v1313
        %1523 = vmatpush1.bf16.xpose.msra.mxu0 %v1312
        %1524 = vmatprep.subr.bf16.mxu0 0
        %1525 = vmatpush2.bf16.xpose.msra.mxu0 0
        %1526 = vmatprep.subr.bf16.mxu0 0
        %1527 = vmatpush2.bf16.xpose.msra.mxu0 0
        %1528 = vmatprep.subr.bf16.mxu0 0
        %1529 = vmatpush2.bf16.xpose.msra.mxu0 0
        %1530 = vmatprep.subr.bf16.mxu0 0
        %1531 = vmatpush2.bf16.xpose.msra.mxu0 0
        %1532 = vmatprep.subr.bf16.mxu0 0
        %1533 = vmatpush2.bf16.xpose.msra.mxu0 0
        %1534 = vmatprep.subr.bf16.mxu0 0
        %1535 = vmatpush2.bf16.xpose.msra.mxu0 0
        %1536 = vmatprep.subr.bf16.mxu0 0
        %1537 = vmatpush2.bf16.xpose.msra.mxu0 0
        %1538 = vmatprep.subr.bf16.mxu0 0
        %1539 = vmatpush2.bf16.xpose.msra.mxu0 0
        %1540 = vmatprep.mubr.bf16.mxu0 %v1114
        %1541 = vmatmul.mubr.bf16.gmra.mxu0 %v1113
        %v1542 = vpop.f32.mrf.mxu0
        %v1543 = vadd.f32 %v1503, %v1542
        %v1544 = vpop.f32.mrf.mxu0
        %v1545 = vpop.f32.mrf.mxu0
        %v1546 = vpop.f32.mrf.mxu0
        %1547 = vdwg.mxu0
        %1548 = vmatprep.subr.bf16.mxu0 0
        %1549 = vmatpush1.bf16.xpose.msra.mxu0 0
        %1550 = vmatprep.subr.bf16.mxu0 0
        %1551 = vmatpush1.bf16.xpose.msra.mxu0 0
        %1552 = vmatprep.subr.bf16.mxu0 0
        %1553 = vmatpush1.bf16.xpose.msra.mxu0 0
        %1554 = vmatprep.subr.bf16.mxu0 0
        %1555 = vmatpush1.bf16.xpose.msra.mxu0 0
        %1556 = vmatprep.subr.bf16.mxu0 %v1360
        %1557 = vmatpush1.bf16.xpose.msra.mxu0 %v1359
        %1558 = vmatprep.subr.bf16.mxu0 %v1345
        %1559 = vmatpush1.bf16.xpose.msra.mxu0 %v1344
        %1560 = vmatprep.subr.bf16.mxu0 %v1330
        %1561 = vmatpush1.bf16.xpose.msra.mxu0 %v1329
        %1562 = vmatprep.subr.bf16.mxu0 %v1315
        %1563 = vmatpush1.bf16.xpose.msra.mxu0 %v1314
        %1564 = vmatprep.subr.bf16.mxu0 0
        %1565 = vmatpush2.bf16.xpose.msra.mxu0 0
        %1566 = vmatprep.subr.bf16.mxu0 0
        %1567 = vmatpush2.bf16.xpose.msra.mxu0 0
        %1568 = vmatprep.subr.bf16.mxu0 0
        %1569 = vmatpush2.bf16.xpose.msra.mxu0 0
        %1570 = vmatprep.subr.bf16.mxu0 0
        %1571 = vmatpush2.bf16.xpose.msra.mxu0 0
        %1572 = vmatprep.subr.bf16.mxu0 0
        %1573 = vmatpush2.bf16.xpose.msra.mxu0 0
        %1574 = vmatprep.subr.bf16.mxu0 0
        %1575 = vmatpush2.bf16.xpose.msra.mxu0 0
        %1576 = vmatprep.subr.bf16.mxu0 0
        %1577 = vmatpush2.bf16.xpose.msra.mxu0 0
        %1578 = vmatprep.subr.bf16.mxu0 0
        %1579 = vmatpush2.bf16.xpose.msra.mxu0 0
        %1580 = vmatprep.mubr.bf16.mxu0 %v1116
        %1581 = vmatmul.mubr.bf16.gmra.mxu0 %v1115
        %v1582 = vpop.f32.mrf.mxu0
        %v1583 = vadd.f32 %v1543, %v1582
        %v1584 = vpop.f32.mrf.mxu0
        %v1585 = vpop.f32.mrf.mxu0
        %v1586 = vpop.f32.mrf.mxu0
        %1587 = vdwg.mxu0
        %1588 = vmatprep.subr.bf16.mxu0 0
        %1589 = vmatpush1.bf16.xpose.msra.mxu0 0
        %1590 = vmatprep.subr.bf16.mxu0 0
        %1591 = vmatpush1.bf16.xpose.msra.mxu0 0
        %1592 = vmatprep.subr.bf16.mxu0 0
        %1593 = vmatpush1.bf16.xpose.msra.mxu0 0
        %1594 = vmatprep.subr.bf16.mxu0 0
        %1595 = vmatpush1.bf16.xpose.msra.mxu0 0
        %1596 = vmatprep.subr.bf16.mxu0 %v1362
        %1597 = vmatpush1.bf16.xpose.msra.mxu0 %v1361
        %1598 = vmatprep.subr.bf16.mxu0 %v1347
        %1599 = vmatpush1.bf16.xpose.msra.mxu0 %v1346
        %1600 = vmatprep.subr.bf16.mxu0 %v1332
        %1601 = vmatpush1.bf16.xpose.msra.mxu0 %v1331
        %1602 = vmatprep.subr.bf16.mxu0 %v1317
        %1603 = vmatpush1.bf16.xpose.msra.mxu0 %v1316
        %1604 = vmatprep.subr.bf16.mxu0 0
        %1605 = vmatpush2.bf16.xpose.msra.mxu0 0
        %1606 = vmatprep.subr.bf16.mxu0 0
        %1607 = vmatpush2.bf16.xpose.msra.mxu0 0
        %1608 = vmatprep.subr.bf16.mxu0 0
        %1609 = vmatpush2.bf16.xpose.msra.mxu0 0
        %1610 = vmatprep.subr.bf16.mxu0 0
        %1611 = vmatpush2.bf16.xpose.msra.mxu0 0
        %1612 = vmatprep.subr.bf16.mxu0 0
        %1613 = vmatpush2.bf16.xpose.msra.mxu0 0
        %1614 = vmatprep.subr.bf16.mxu0 0
        %1615 = vmatpush2.bf16.xpose.msra.mxu0 0
        %1616 = vmatprep.subr.bf16.mxu0 0
        %1617 = vmatpush2.bf16.xpose.msra.mxu0 0
        %1618 = vmatprep.subr.bf16.mxu0 0
        %1619 = vmatpush2.bf16.xpose.msra.mxu0 0
        %1620 = vmatprep.mubr.bf16.mxu0 %v1118
        %1621 = vmatmul.mubr.bf16.gmra.mxu0 %v1117
        %v1622 = vpop.f32.mrf.mxu0
        %v1623 = vadd.f32 %v1583, %v1622
        %v1624 = vpop.f32.mrf.mxu0
        %v1625 = vpop.f32.mrf.mxu0
        %v1626 = vpop.f32.mrf.mxu0
        %1627 = vdwg.mxu0
        %1628 = vmatprep.subr.bf16.mxu0 0
        %1629 = vmatpush1.bf16.xpose.msra.mxu0 0
        %1630 = vmatprep.subr.bf16.mxu0 0
        %1631 = vmatpush1.bf16.xpose.msra.mxu0 0
        %1632 = vmatprep.subr.bf16.mxu0 0
        %1633 = vmatpush1.bf16.xpose.msra.mxu0 0
        %1634 = vmatprep.subr.bf16.mxu0 0
        %1635 = vmatpush1.bf16.xpose.msra.mxu0 0
        %1636 = vmatprep.subr.bf16.mxu0 %v1364
        %1637 = vmatpush1.bf16.xpose.msra.mxu0 %v1363
        %1638 = vmatprep.subr.bf16.mxu0 %v1349
        %1639 = vmatpush1.bf16.xpose.msra.mxu0 %v1348
        %1640 = vmatprep.subr.bf16.mxu0 %v1334
        %1641 = vmatpush1.bf16.xpose.msra.mxu0 %v1333
        %1642 = vmatprep.subr.bf16.mxu0 %v1319
        %1643 = vmatpush1.bf16.xpose.msra.mxu0 %v1318
        %1644 = vmatprep.subr.bf16.mxu0 0
        %1645 = vmatpush2.bf16.xpose.msra.mxu0 0
        %1646 = vmatprep.subr.bf16.mxu0 0
        %1647 = vmatpush2.bf16.xpose.msra.mxu0 0
        %1648 = vmatprep.subr.bf16.mxu0 0
        %1649 = vmatpush2.bf16.xpose.msra.mxu0 0
        %1650 = vmatprep.subr.bf16.mxu0 0
        %1651 = vmatpush2.bf16.xpose.msra.mxu0 0
        %1652 = vmatprep.subr.bf16.mxu0 0
        %1653 = vmatpush2.bf16.xpose.msra.mxu0 0
        %1654 = vmatprep.subr.bf16.mxu0 0
        %1655 = vmatpush2.bf16.xpose.msra.mxu0 0
        %1656 = vmatprep.subr.bf16.mxu0 0
        %1657 = vmatpush2.bf16.xpose.msra.mxu0 0
        %1658 = vmatprep.subr.bf16.mxu0 0
        %1659 = vmatpush2.bf16.xpose.msra.mxu0 0
        %1660 = vmatprep.mubr.bf16.mxu0 %v1120
        %1661 = vmatmul.mubr.bf16.gmra.mxu0 %v1119
        %v1662 = vpop.f32.mrf.mxu0
        %v1663 = vadd.f32 %v1623, %v1662
        %v1664 = vpop.f32.mrf.mxu0
        %v1665 = vpop.f32.mrf.mxu0
        %v1666 = vpop.f32.mrf.mxu0
        %1667 = vdwg.mxu0
        %1668 = vmatprep.subr.bf16.mxu0 0
        %1669 = vmatpush1.bf16.xpose.msra.mxu0 0
        %1670 = vmatprep.subr.bf16.mxu0 0
        %1671 = vmatpush1.bf16.xpose.msra.mxu0 0
        %1672 = vmatprep.subr.bf16.mxu0 0
        %1673 = vmatpush1.bf16.xpose.msra.mxu0 0
        %1674 = vmatprep.subr.bf16.mxu0 0
        %1675 = vmatpush1.bf16.xpose.msra.mxu0 0
        %1676 = vmatprep.subr.bf16.mxu0 %v1366
        %1677 = vmatpush1.bf16.xpose.msra.mxu0 %v1365
        %1678 = vmatprep.subr.bf16.mxu0 %v1351
        %1679 = vmatpush1.bf16.xpose.msra.mxu0 %v1350
        %1680 = vmatprep.subr.bf16.mxu0 %v1336
        %1681 = vmatpush1.bf16.xpose.msra.mxu0 %v1335
        %1682 = vmatprep.subr.bf16.mxu0 %v1321
        %1683 = vmatpush1.bf16.xpose.msra.mxu0 %v1320
        %1684 = vmatprep.subr.bf16.mxu0 0
        %1685 = vmatpush2.bf16.xpose.msra.mxu0 0
        %1686 = vmatprep.subr.bf16.mxu0 0
        %1687 = vmatpush2.bf16.xpose.msra.mxu0 0
        %1688 = vmatprep.subr.bf16.mxu0 0
        %1689 = vmatpush2.bf16.xpose.msra.mxu0 0
        %1690 = vmatprep.subr.bf16.mxu0 0
        %1691 = vmatpush2.bf16.xpose.msra.mxu0 0
        %1692 = vmatprep.subr.bf16.mxu0 0
        %1693 = vmatpush2.bf16.xpose.msra.mxu0 0
        %1694 = vmatprep.subr.bf16.mxu0 0
        %1695 = vmatpush2.bf16.xpose.msra.mxu0 0
        %1696 = vmatprep.subr.bf16.mxu0 0
        %1697 = vmatpush2.bf16.xpose.msra.mxu0 0
        %1698 = vmatprep.subr.bf16.mxu0 0
        %1699 = vmatpush2.bf16.xpose.msra.mxu0 0
        %1700 = vmatprep.mubr.bf16.mxu0 %v1122
        %1701 = vmatmul.mubr.bf16.gmra.mxu0 %v1121
        %v1702 = vpop.f32.mrf.mxu0
        %v1703 = vadd.f32 %v1663, %v1702
        %v1704 = vpop.f32.mrf.mxu0
        %v1705 = vpop.f32.mrf.mxu0
        %v1706 = vpop.f32.mrf.mxu0
        %1707 = vdwg.mxu0
        %1708 = vmatprep.subr.bf16.mxu0 0
        %1709 = vmatpush1.bf16.xpose.msra.mxu0 0
        %1710 = vmatprep.subr.bf16.mxu0 0
        %1711 = vmatpush1.bf16.xpose.msra.mxu0 0
        %1712 = vmatprep.subr.bf16.mxu0 0
        %1713 = vmatpush1.bf16.xpose.msra.mxu0 0
        %1714 = vmatprep.subr.bf16.mxu0 0
        %1715 = vmatpush1.bf16.xpose.msra.mxu0 0
        %1716 = vmatprep.subr.bf16.mxu0 0
        %1717 = vmatpush1.bf16.xpose.msra.mxu0 %v1367
        %1718 = vmatprep.subr.bf16.mxu0 0
        %1719 = vmatpush1.bf16.xpose.msra.mxu0 %v1352
        %1720 = vmatprep.subr.bf16.mxu0 0
        %1721 = vmatpush1.bf16.xpose.msra.mxu0 %v1337
        %1722 = vmatprep.subr.bf16.mxu0 0
        %1723 = vmatpush1.bf16.xpose.msra.mxu0 %v1322
        %1724 = vmatprep.subr.bf16.mxu0 0
        %1725 = vmatpush2.bf16.xpose.msra.mxu0 0
        %1726 = vmatprep.subr.bf16.mxu0 0
        %1727 = vmatpush2.bf16.xpose.msra.mxu0 0
        %1728 = vmatprep.subr.bf16.mxu0 0
        %1729 = vmatpush2.bf16.xpose.msra.mxu0 0
        %1730 = vmatprep.subr.bf16.mxu0 0
        %1731 = vmatpush2.bf16.xpose.msra.mxu0 0
        %1732 = vmatprep.subr.bf16.mxu0 0
        %1733 = vmatpush2.bf16.xpose.msra.mxu0 0
        %1734 = vmatprep.subr.bf16.mxu0 0
        %1735 = vmatpush2.bf16.xpose.msra.mxu0 0
        %1736 = vmatprep.subr.bf16.mxu0 0
        %1737 = vmatpush2.bf16.xpose.msra.mxu0 0
        %1738 = vmatprep.subr.bf16.mxu0 0
        %1739 = vmatpush2.bf16.xpose.msra.mxu0 0
        %1740 = vmatprep.mubr.bf16.mxu0 0
        %1741 = vmatmul.mubr.bf16.gmra.mxu0 %v1123
        %v1742 = vpop.f32.mrf.mxu0
        %v1743 = vadd.f32 %v1703, %v1742
        %v1744 = vpop.f32.mrf.mxu0
        %v1745 = vpop.f32.mrf.mxu0
        %v1746 = vpop.f32.mrf.mxu0
        %1747 = vdwg.mxu0
        %v1748 = vpack.c.bf16 %v1743, %v1743
        %v1750 = vlaneseq
        %v1751 = vshrl.u32 %v1750, 7
        %v1752 = vsub.s32 0, %v1751
        %v1753 = vrot.slane %v427, %v1752
        %v1756 = vsel %vm490, %v1748, 0
        %1758 = vmatprep.subr.bf16.mxu0 0
        %1759 = vmatpush1.bf16.msra.mxu0 0
        %1760 = vmatprep.subr.bf16.mxu0 0
        %1761 = vmatpush1.bf16.msra.mxu0 0
        %1762 = vmatprep.subr.bf16.mxu0 0
        %1763 = vmatpush1.bf16.msra.mxu0 0
        %1764 = vmatprep.subr.bf16.mxu0 0
        %1765 = vmatpush1.bf16.msra.mxu0 0
        %1766 = vmatprep.subr.bf16.mxu0 0
        %1767 = vmatpush1.bf16.msra.mxu0 0
        %1768 = vmatprep.subr.bf16.mxu0 0
        %1769 = vmatpush1.bf16.msra.mxu0 0
        %1770 = vmatprep.subr.bf16.mxu0 0
        %1771 = vmatpush1.bf16.msra.mxu0 0
        %1772 = vmatprep.subr.bf16.mxu0 0
        %1773 = vmatpush1.bf16.msra.mxu0 %v1756
        %1774 = vmatprep.subr.bf16.mxu0 0
        %1775 = vmatpush2.bf16.msra.mxu0 0
        %1776 = vmatprep.subr.bf16.mxu0 0
        %1777 = vmatpush2.bf16.msra.mxu0 0
        %1778 = vmatprep.subr.bf16.mxu0 0
        %1779 = vmatpush2.bf16.msra.mxu0 0
        %1780 = vmatprep.subr.bf16.mxu0 0
        %1781 = vmatpush2.bf16.msra.mxu0 0
        %1782 = vmatprep.subr.bf16.mxu0 0
        %1783 = vmatpush2.bf16.msra.mxu0 0
        %1784 = vmatprep.subr.bf16.mxu0 0
        %1785 = vmatpush2.bf16.msra.mxu0 0
        %1786 = vmatprep.subr.bf16.mxu0 0
        %1787 = vmatpush2.bf16.msra.mxu0 0
        %1788 = vmatprep.subr.bf16.mxu0 0
        %1789 = vmatpush2.bf16.msra.mxu0 0
        %1790 = vmatprep.mubr.bf16.mxu0 0
        %1791 = vmatmul.mubr.bf16.gmra.mxu0 %v488
        %v1792 = vpop.f32.mrf.mxu0
        %v1793 = vadd.f32 %v1753, %v1792
        %v1794 = vpop.f32.mrf.mxu0
        %v1795 = vpop.f32.mrf.mxu0
        %v1796 = vpop.f32.mrf.mxu0
        %1797 = vdwg.mxu0
        %v1798 = vtanh.pop %v1793
        %vm1799 = vcmask 523264
        %1800 = vst.msk [vmem:[%s317] sm:$0xff] %vm1799, %v1798
        %s1801 = sand.u32 %s149, 1
        %s1802 = scalar_lea.sflag [#allocation4], %s1801
        %s1803 = sand.u32 %s149, 1
        %s1804 = smul.addr %s1803, 8
        %s1805 = scalar_lea.vmem [#allocation11], %s1804
        // Predicated region
        $region61: #{_decoder_forward_batched.1} parent=39 // pred_check
          %p1806 = pneg %p159
        $region62: #{_decoder_forward_batched.1} parent=39 // pred_check_branch
          %1808 = sbr.rel (%p1806) target = $region64
        $region63: #{_decoder_forward_batched.1} parent=39 // pred_region
          %s1810 = ssub.s32 128, 128
          %1811 = vsyncadd %s1802, %s1810
          %s1812 = smul.addr %s26, 128
          %s1813 = scalar_lea.hbm %s5, %s1812
          %s1815 = sshll.u32 %s1805, 4
          %s1816 = int_to_ptr.vmem [resolvable:$true] %s1815
          %1818 = dma.vmem_to_hbm [thread:$0]  %s1816, 128, %s1813, %s1802
        $region64: #{_decoder_forward_batched.1} parent=39 // pred_fallthru
          _
      $region40: #{_decoder_forward_batched.1} parent=5 // pred_fallthru
        _
      %p1819 = scmp.le.s32.totalorder 2, %s21
      // Predicated region
      $region65: #{_decoder_forward_batched.1} parent=5 // pred_check
        %p1820 = pneg %p1819
      $region66: #{_decoder_forward_batched.1} parent=5 // pred_check_branch
        %1822 = sbr.rel (%p1820) target = $region68
      $region67: #{_decoder_forward_batched.1} parent=5 // pred_region
        %s1823 = ssub.s32 %s21, 2
        // Predicated region
        $region69: #{_decoder_forward_batched.1} parent=67 // pred_check
          %p1824 = pneg %p165
        $region70: #{_decoder_forward_batched.1} parent=67 // pred_check_branch
          %1826 = sbr.rel (%p1824) target = $region72
        $region71: #{_decoder_forward_batched.1} parent=67 // pred_region
          %s1827 = sand.u32 %s150, 1
          %s1828 = scalar_lea.sflag [#allocation4], %s1827
          %s1829 = sand.u32 %s150, 1
          %s1830 = smul.addr %s1829, 8
          %s1831 = scalar_lea.vmem [#allocation11], %s1830
          %1832 = dma.done %s1828, 128
        $region72: #{_decoder_forward_batched.1} parent=67 // pred_fallthru
          _
      $region68: #{_decoder_forward_batched.1} parent=5 // pred_fallthru
        _
    $region6: #{_decoder_forward_batched.1} parent=1 // loop_footer
      %s25 = sadd.s32 1, %s21
    $region7: #{_decoder_forward_batched.1} parent=1 // loop_footer_branch
      %20 = sbr.rel target = $region3
    $region8: #{_decoder_forward_batched.1} parent=1 // loop_exit
      _
    %1833 = vsyncpa [#allocation3], 1
    %s1834 = scalar_lea.sflag [#allocation3], 1
    %1835 = vsyncpa %s1834, 1
    %1836 = vsyncpa [#allocation6], 1
    %s1837 = scalar_lea.sflag [#allocation6], 1
    %1838 = vsyncpa %s1837, 1
    %1839 = vsyncpa [#allocation9], 1
    %1840 = vsyncpa [#allocation4], 1
    %s1841 = scalar_lea.sflag [#allocation4], 1
    %1842 = vsyncpa %s1841, 1

</llo_original>
